<compile_context>
chip_gen: v7x
topology: tpu7x:2x2x1
jax: 0.10.0
libtpu: 0.0.40
codegen_flags: <defaults>
</compile_context>

<pallas_src>
import jax
import jax.numpy as jnp
from jax.experimental import pallas as pl
from jax.experimental.pallas import tpu as pltpu

# ---- small synthetic model dimensions -------------------------------------
VOCAB = 64
SEQ = 8
HIDDEN = 128
HEADS = 4
HEAD_DIM = HIDDEN // HEADS
FFN = 256                     # == 2 * HIDDEN
NUM_FEATS = 2                 # temperature, vibration
NUM_LABELS = 3                # Failure / Warning / Routine
BATCH = 2

assert HIDDEN % HEADS == 0
assert FFN <= 3 * HIDDEN      # b1 is padded into the [2, 3*HIDDEN] bias bank

# Row indices inside the packed [ROWS, HIDDEN] f32 vector bank.
R_TOK = 0                          # rows 0..63   : token embedding table
R_POS = VOCAB                      # rows 64..71  : positional embeddings
R_LNE_G = VOCAB + SEQ              # 72
R_LNE_B = R_LNE_G + 1              # 73
R_BO = R_LNE_B + 1                 # 74
R_LN1_G = R_BO + 1                 # 75
R_LN1_B = R_LN1_G + 1              # 76
R_B2 = R_LN1_B + 1                 # 77
R_LN2_G = R_B2 + 1                 # 78
R_LN2_B = R_LN2_G + 1              # 79
R_WN = R_LN2_B + 1                 # 80..81 : numerical-feature head weights (padded)
R_BFC = R_WN + NUM_FEATS           # 82     : head bias (padded)
ROWS = R_BFC + 1                   # 83

# Column offsets inside the packed [HIDDEN, 896] bf16 weight slab.
C_Q, C_K, C_V, C_O = 0, HIDDEN, 2 * HIDDEN, 3 * HIDDEN
C_W1 = 4 * HIDDEN                  # 512 .. 512+FFN
C_WT = 4 * HIDDEN + FFN            # 768 .. 896 (wt padded to 128 lanes)
C_END = C_WT + HIDDEN              # 896

PACKED_NAMES = ("vbank128", "vbank_wide", "w_big", "w2")


def _layernorm(x, gamma, beta, eps=1e-12):
    mean = jnp.mean(x, axis=-1, keepdims=True)
    var = jnp.mean((x - mean) ** 2, axis=-1, keepdims=True)
    return (x - mean) * jax.lax.rsqrt(var + eps) * gamma + beta


def _mm(a, w):
    """Matmul with the activation cast once to the weight dtype (bf16 for the
    big weights), accumulating in f32 on the MXU."""
    return jnp.dot(a.astype(w.dtype), w, preferred_element_type=jnp.float32)


def _forward_math(tok, num, p, *, approx_recip):
    """Shared math for the Pallas kernel body and the pure-JAX reference.

    tok: [B*SEQ, 1] int32 token ids, num: [B, NUM_FEATS] f32.
    p entries may be Pallas Refs or jnp arrays; they are only ever read via
    static 2-D slices (works identically for both)."""
    bank = p["vbank128"]                  # [ROWS, 128] f32
    vw = p["vbank_wide"]                  # [2, 3*HIDDEN] f32
    w_big = p["w_big"]                    # [HIDDEN, 896] bf16
    w2 = p["w2"]                          # [FFN, HIDDEN] bf16

    bs = tok.shape[0]
    b = bs // SEQ

    tok_emb = bank[R_TOK:R_TOK + VOCAB, :]            # [VOCAB, H] f32
    pos_emb = bank[R_POS:R_POS + SEQ, :]               # [SEQ, H]
    lne_g = bank[R_LNE_G:R_LNE_G + 1, :]
    lne_b = bank[R_LNE_B:R_LNE_B + 1, :]
    bo = bank[R_BO:R_BO + 1, :]
    ln1_g = bank[R_LN1_G:R_LN1_G + 1, :]
    ln1_b = bank[R_LN1_B:R_LN1_B + 1, :]
    b2 = bank[R_B2:R_B2 + 1, :]
    ln2_g = bank[R_LN2_G:R_LN2_G + 1, :]
    ln2_b = bank[R_LN2_B:R_LN2_B + 1, :]
    wn_pad = bank[R_WN:R_WN + NUM_FEATS, :]            # [F, H] (labels in lanes 0..2)
    bfc_pad = bank[R_BFC:R_BFC + 1, :]                 # [1, H]

    b_qkv = vw[0:1, :]                                 # [1, 3H] = bq | bk | bv
    b1 = vw[1:2, 0:FFN]                                # [1, FFN]

    # --- in-kernel embedding gather (one-hot @ table on the MXU) ------------
    one_hot = (jax.lax.broadcasted_iota(jnp.int32, (bs, VOCAB), 1)
               == tok).astype(jnp.float32)             # [B*S, VOCAB]
    x = jnp.dot(one_hot, tok_emb, preferred_element_type=jnp.float32)
    x = (x.reshape(b, SEQ, HIDDEN) + pos_emb[None]).reshape(bs, HIDDEN)

    # --- embedding LayerNorm (all rows; CLS rows are sliced from this) ------
    h_all = _layernorm(x, lne_g, lne_b)                # [B*S, H]

    # --- fused Q|K|V projection for all rows ---------------------------------
    qkv = _mm(h_all, w_big[:, C_Q:C_O]) + b_qkv        # [B*S, 3H]
    qkv3 = qkv.reshape(b, SEQ, 3 * HIDDEN)
    q = qkv3[:, 0, 0:HIDDEN]                           # [B, H]  (CLS rows only)
    k3 = qkv3[:, :, HIDDEN:2 * HIDDEN]                 # [B, S, H]
    v3 = qkv3[:, :, 2 * HIDDEN:3 * HIDDEN]             # [B, S, H]

    # --- per-head attention, contexts lane-concatenated, one output matmul ---
    scale = 1.0 / (HEAD_DIM ** 0.5)
    ctx_heads = []
    for hh in range(HEADS):
        sl = slice(hh * HEAD_DIM, (hh + 1) * HEAD_DIM)
        qh = q[:, sl].reshape(b, 1, HEAD_DIM)          # [B, 1, HD]
        kh = k3[:, :, sl]                              # [B, S, HD]
        vh = v3[:, :, sl]
        scores = jnp.einsum('bqd,bkd->bqk', qh, kh,
                            preferred_element_type=jnp.float32) * scale
        scores = scores - jnp.max(scores, axis=-1, keepdims=True)
        probs = jnp.exp(scores)
        denom = jnp.sum(probs, axis=-1, keepdims=True)
        inv = pl.reciprocal(denom, approx=True) if approx_recip else 1.0 / denom
        probs = probs * inv
        ctx = jnp.einsum('bqk,bkd->bqd', probs, vh,
                         preferred_element_type=jnp.float32)            # [B,1,HD]
        ctx_heads.append(ctx.reshape(b, HEAD_DIM))
    ctx = jnp.concatenate(ctx_heads, axis=-1)           # [B, H]
    attn_out = _mm(ctx, w_big[:, C_O:C_W1]) + bo        # single K=128 matmul

    h_cls = h_all.reshape(b, SEQ, HIDDEN)[:, 0, :]      # derived, not recomputed
    h1 = _layernorm(h_cls + attn_out, ln1_g, ln1_b)     # [B, H]

    # --- feed-forward (tanh GELU), CLS rows only ------------------------------
    ffn = jax.nn.gelu(_mm(h1, w_big[:, C_W1:C_WT]) + b1)    # [B, FFN]
    ffn = _mm(ffn, w2[:, :]) + b2                            # [B, H]
    h2 = _layernorm(h1 + ffn, ln2_g, ln2_b)

    # --- fusion head: concat(cls, num) @ W_fc, lane-padded to 128 -------------
    num_contrib = bfc_pad                                    # broadcasts to [B, H]
    for f in range(NUM_FEATS):
        num_contrib = num_contrib + num[:, f:f + 1] * wn_pad[f:f + 1, :]
    logits_pad = _mm(h2, w_big[:, C_WT:C_END]) + num_contrib  # [B, 128]
    return logits_pad[:, 0:NUM_LABELS]                        # [B, NUM_LABELS]


def fused_kernel(tok_ref, num_ref, bank_ref, vw_ref, w_big_ref, w2_ref, out_ref):
    p = {"vbank128": bank_ref, "vbank_wide": vw_ref,
         "w_big": w_big_ref, "w2": w2_ref}
    out_ref[...] = _forward_math(tok_ref[...], num_ref[...], p, approx_recip=True)


def init_params(key):
    ks = jax.random.split(key, 11)
    dense = lambda k, shape: (0.02 * jax.random.normal(k, shape)).astype(jnp.float32)
    ones = lambda n: jnp.ones((1, n), jnp.float32)
    zeros = lambda n: jnp.zeros((1, n), jnp.float32)

    tok_emb = dense(ks[0], (VOCAB, HIDDEN))
    pos_emb = dense(ks[1], (SEQ, HIDDEN))
    wq = dense(ks[2], (HIDDEN, HIDDEN))
    wk = dense(ks[3], (HIDDEN, HIDDEN))
    wv = dense(ks[4], (HIDDEN, HIDDEN))
    wo = dense(ks[5], (HIDDEN, HIDDEN))
    w1 = dense(ks[6], (HIDDEN, FFN))
    w2 = dense(ks[7], (FFN, HIDDEN))
    wt = dense(ks[8], (HIDDEN, NUM_LABELS))
    wn = dense(ks[9], (NUM_FEATS, NUM_LABELS))
    bfc = dense(ks[10], (1, NUM_LABELS))

    bq, bk, bv, bo = zeros(HIDDEN), zeros(HIDDEN), zeros(HIDDEN), zeros(HIDDEN)
    b1, b2 = zeros(FFN), zeros(HIDDEN)
    lne_g, lne_b = ones(HIDDEN), zeros(HIDDEN)
    ln1_g, ln1_b = ones(HIDDEN), zeros(HIDDEN)
    ln2_g, ln2_b = ones(HIDDEN), zeros(HIDDEN)

    pad_lab = lambda a: jnp.pad(a, ((0, 0), (0, HIDDEN - NUM_LABELS)))
    wt_pad, wn_pad, bfc_pad = pad_lab(wt), pad_lab(wn), pad_lab(bfc)

    # one bf16 slab holding every big matmul weight (single DMA descriptor)
    w_big = jnp.concatenate([wq, wk, wv, wo, w1, wt_pad], axis=1).astype(jnp.bfloat16)
    # one f32 bank for every 128-lane vector + both embedding tables
    vbank128 = jnp.concatenate(
        [tok_emb, pos_emb, lne_g, lne_b, bo, ln1_g, ln1_b, b2, ln2_g, ln2_b,
         wn_pad, bfc_pad], axis=0)
    # wide biases: row0 = bq|bk|bv, row1 = b1|zeros
    vbank_wide = jnp.concatenate(
        [jnp.concatenate([bq, bk, bv], axis=1),
         jnp.concatenate([b1, jnp.zeros((1, 3 * HIDDEN - FFN), jnp.float32)], axis=1)],
        axis=0)

    assert w_big.shape == (HIDDEN, C_END)
    assert vbank128.shape == (ROWS, HIDDEN)
    assert vbank_wide.shape == (2, 3 * HIDDEN)

    return {"w_big": w_big, "w2": w2.astype(jnp.bfloat16),
            "vbank128": vbank128, "vbank_wide": vbank_wide}


def _full_spec(shape):
    zeros = (0,) * len(shape)
    return pl.BlockSpec(tuple(shape), lambda i, z=zeros: z)


def predictive_maintenance_forward(token_ids, numerical, params):
    B, S = token_ids.shape
    assert S == SEQ
    tok = token_ids.reshape(B * SEQ, 1).astype(jnp.int32)
    num = numerical.astype(jnp.float32)

    ins = [tok, num] + [params[n] for n in PACKED_NAMES]
    in_specs = [_full_spec(a.shape) for a in ins]

    # Advisory cost estimate so XLA can schedule surrounding ops around the call.
    cost = pl.CostEstimate(flops=2_400_000, transcendentals=800,
                           bytes_accessed=345_000)

    out = pl.pallas_call(
        fused_kernel,
        out_shape=jax.ShapeDtypeStruct((B, NUM_LABELS), jnp.float32),
        grid=(1,),                                  # whole batch in one step
        in_specs=in_specs,
        out_specs=pl.BlockSpec((B, NUM_LABELS), lambda i: (0, 0)),
        compiler_params=pltpu.CompilerParams(
            dimension_semantics=("arbitrary",)),
        cost_estimate=cost,
    )(*ins)
    return out


def reference_forward(token_ids, numerical, params):
    B = token_ids.shape[0]
    tok = token_ids.reshape(B * SEQ, 1).astype(jnp.int32)
    p = {n: params[n] for n in PACKED_NAMES}
    return _forward_math(tok, numerical.astype(jnp.float32), p, approx_recip=False)


if __name__ == "__main__":
    key = jax.random.PRNGKey(0)
    k_param, k_tok, k_num = jax.random.split(key, 3)

    params = init_params(k_param)

    token_ids = jax.random.randint(k_tok, (BATCH, SEQ), 0, VOCAB)
    # synthetic (temperature, vibration) readings, standardized like StandardScaler
    raw_num = jax.random.normal(k_num, (BATCH, NUM_FEATS), jnp.float32) * 5.0 + 80.0
    numerical = (raw_num - raw_num.mean(axis=0, keepdims=True)) / (
        raw_num.std(axis=0, keepdims=True) + 1e-6)

    logits = predictive_maintenance_forward(token_ids, numerical, params)
    jax.block_until_ready(logits)

    ref = reference_forward(token_ids, numerical, params)
    assert logits.shape == (BATCH, NUM_LABELS)
    assert jnp.allclose(logits, ref, atol=1e-3, rtol=1e-3), (logits, ref)

    print("KERNEL_OK")
</pallas_src>

<mosaic_0001>
module attributes {stable_mosaic.version = 11 : i64} {
  func.func @fused_kernel(%arg0: i32, %arg1: memref<16x1xi32, #tpu.memory_space<vmem>>, %arg2: memref<2x2xf32, #tpu.memory_space<vmem>>, %arg3: memref<83x128xf32, #tpu.memory_space<vmem>>, %arg4: memref<2x384xf32, #tpu.memory_space<vmem>>, %arg5: memref<128x896xbf16, #tpu.memory_space<vmem>>, %arg6: memref<256x128xbf16, #tpu.memory_space<vmem>>, %arg7: memref<2x3xf32, #tpu.memory_space<vmem>>) attributes {dimension_semantics = [#tpu.dimension_semantics<arbitrary>], iteration_bounds = array<i64: 1>, scalar_prefetch = 0 : i64, scratch_operands = 0 : i64, tpu.core_type = #tpu.core_type<tc>, window_params = [{pipeline_mode = #tpu.pipeline_mode<synchronous>, transform_indices = @transform_0, window_bounds = array<i64: 16, 1>}, {pipeline_mode = #tpu.pipeline_mode<synchronous>, transform_indices = @transform_1, window_bounds = array<i64: 2, 2>}, {pipeline_mode = #tpu.pipeline_mode<synchronous>, transform_indices = @transform_2, window_bounds = array<i64: 83, 128>}, {pipeline_mode = #tpu.pipeline_mode<synchronous>, transform_indices = @transform_3, window_bounds = array<i64: 2, 384>}, {pipeline_mode = #tpu.pipeline_mode<synchronous>, transform_indices = @transform_4, window_bounds = array<i64: 128, 896>}, {pipeline_mode = #tpu.pipeline_mode<synchronous>, transform_indices = @transform_5, window_bounds = array<i64: 256, 128>}, {pipeline_mode = #tpu.pipeline_mode<synchronous>, transform_indices = @transform_6, window_bounds = array<i64: 2, 3>}]} {
    %c0 = arith.constant 0 : index
    %c0_0 = arith.constant 0 : index
    %0 = vector.load %arg1[%c0, %c0_0] : memref<16x1xi32, #tpu.memory_space<vmem>>, vector<16x1xi32>
    %c0_1 = arith.constant 0 : index
    %c0_2 = arith.constant 0 : index
    %1 = vector.load %arg2[%c0_1, %c0_2] : memref<2x2xf32, #tpu.memory_space<vmem>>, vector<2x2xf32>
    %c0_3 = arith.constant 0 : index
    %c0_4 = arith.constant 0 : index
    %2 = vector.load %arg3[%c0_3, %c0_4] : memref<83x128xf32, #tpu.memory_space<vmem>>, vector<64x128xf32>
    %c64 = arith.constant 64 : index
    %c0_5 = arith.constant 0 : index
    %3 = vector.load %arg3[%c64, %c0_5] : memref<83x128xf32, #tpu.memory_space<vmem>>, vector<8x128xf32>
    %c72 = arith.constant 72 : index
    %c0_6 = arith.constant 0 : index
    %4 = vector.load %arg3[%c72, %c0_6] : memref<83x128xf32, #tpu.memory_space<vmem>>, vector<1x128xf32>
    %c73 = arith.constant 73 : index
    %c0_7 = arith.constant 0 : index
    %5 = vector.load %arg3[%c73, %c0_7] : memref<83x128xf32, #tpu.memory_space<vmem>>, vector<1x128xf32>
    %c74 = arith.constant 74 : index
    %c0_8 = arith.constant 0 : index
    %6 = vector.load %arg3[%c74, %c0_8] : memref<83x128xf32, #tpu.memory_space<vmem>>, vector<1x128xf32>
    %c75 = arith.constant 75 : index
    %c0_9 = arith.constant 0 : index
    %7 = vector.load %arg3[%c75, %c0_9] : memref<83x128xf32, #tpu.memory_space<vmem>>, vector<1x128xf32>
    %c76 = arith.constant 76 : index
    %c0_10 = arith.constant 0 : index
    %8 = vector.load %arg3[%c76, %c0_10] : memref<83x128xf32, #tpu.memory_space<vmem>>, vector<1x128xf32>
    %c77 = arith.constant 77 : index
    %c0_11 = arith.constant 0 : index
    %9 = vector.load %arg3[%c77, %c0_11] : memref<83x128xf32, #tpu.memory_space<vmem>>, vector<1x128xf32>
    %c78 = arith.constant 78 : index
    %c0_12 = arith.constant 0 : index
    %10 = vector.load %arg3[%c78, %c0_12] : memref<83x128xf32, #tpu.memory_space<vmem>>, vector<1x128xf32>
    %c79 = arith.constant 79 : index
    %c0_13 = arith.constant 0 : index
    %11 = vector.load %arg3[%c79, %c0_13] : memref<83x128xf32, #tpu.memory_space<vmem>>, vector<1x128xf32>
    %c80 = arith.constant 80 : index
    %c0_14 = arith.constant 0 : index
    %12 = vector.load %arg3[%c80, %c0_14] : memref<83x128xf32, #tpu.memory_space<vmem>>, vector<2x128xf32>
    %c82 = arith.constant 82 : index
    %c0_15 = arith.constant 0 : index
    %13 = vector.load %arg3[%c82, %c0_15] : memref<83x128xf32, #tpu.memory_space<vmem>>, vector<1x128xf32>
    %c0_16 = arith.constant 0 : index
    %c0_17 = arith.constant 0 : index
    %14 = vector.load %arg4[%c0_16, %c0_17] : memref<2x384xf32, #tpu.memory_space<vmem>>, vector<1x384xf32>
    %c1 = arith.constant 1 : index
    %c0_18 = arith.constant 0 : index
    %15 = vector.load %arg4[%c1, %c0_18] : memref<2x384xf32, #tpu.memory_space<vmem>>, vector<1x256xf32>
    %16 = tpu.iota {dimensions = array<i32: 1>} : vector<16x64xi32>
    %17 = vector.broadcast %0 : vector<16x1xi32> to vector<16x64xi32>
    %18 = arith.cmpi eq, %16, %17 : vector<16x64xi32>
    %19 = arith.extui %18 : vector<16x64xi1> to vector<16x64xi32>
    %20 = arith.sitofp %19 : vector<16x64xi32> to vector<16x64xf32>
    %cst = arith.constant dense<0.000000e+00> : vector<16x128xf32>
    %21 = tpu.matmul %20, %2, %cst {dimension_numbers = #tpu.dot_dimension_numbers<[1], [0], [0], [1], [0, 0, 1, 1], [], []>} : vector<16x64xf32>, vector<64x128xf32>, vector<16x128xf32> -> vector<16x128xf32>
    %22 = vector.shape_cast %21 : vector<16x128xf32> to vector<2x8x128xf32>
    %23 = vector.shape_cast %3 : vector<8x128xf32> to vector<1x8x128xf32>
    %24 = vector.broadcast %23 : vector<1x8x128xf32> to vector<2x8x128xf32>
    %25 = arith.addf %22, %24 : vector<2x8x128xf32>
    %26 = vector.shape_cast %25 : vector<2x8x128xf32> to vector<16x128xf32>
    %cst_19 = arith.constant dense<0.000000e+00> : vector<16xf32>
    %27 = vector.multi_reduction <add>, %26, %cst_19 [1] : vector<16x128xf32> to vector<16xf32>
    %28 = vector.shape_cast %27 : vector<16xf32> to vector<16x1xf32>
    %cst_20 = arith.constant 1.280000e+02 : f32
    %29 = vector.broadcast %cst_20 : f32 to vector<16x1xf32>
    %30 = arith.divf %28, %29 : vector<16x1xf32>
    %31 = vector.broadcast %30 : vector<16x1xf32> to vector<16x128xf32>
    %32 = arith.subf %26, %31 : vector<16x128xf32>
    %33 = arith.mulf %32, %32 : vector<16x128xf32>
    %cst_21 = arith.constant dense<0.000000e+00> : vector<16xf32>
    %34 = vector.multi_reduction <add>, %33, %cst_21 [1] : vector<16x128xf32> to vector<16xf32>
    %35 = vector.shape_cast %34 : vector<16xf32> to vector<16x1xf32>
    %cst_22 = arith.constant 1.280000e+02 : f32
    %36 = vector.broadcast %cst_22 : f32 to vector<16x1xf32>
    %37 = arith.divf %35, %36 : vector<16x1xf32>
    %38 = vector.broadcast %30 : vector<16x1xf32> to vector<16x128xf32>
    %39 = arith.subf %26, %38 : vector<16x128xf32>
    %cst_23 = arith.constant 9.99999996E-13 : f32
    %40 = vector.broadcast %cst_23 : f32 to vector<16x1xf32>
    %41 = arith.addf %37, %40 : vector<16x1xf32>
    %42 = math.rsqrt %41 : vector<16x1xf32>
    %43 = vector.broadcast %42 : vector<16x1xf32> to vector<16x128xf32>
    %44 = arith.mulf %39, %43 : vector<16x128xf32>
    %45 = vector.broadcast %4 : vector<1x128xf32> to vector<16x128xf32>
    %46 = arith.mulf %44, %45 : vector<16x128xf32>
    %47 = vector.broadcast %5 : vector<1x128xf32> to vector<16x128xf32>
    %48 = arith.addf %46, %47 : vector<16x128xf32>
    %c0_24 = arith.constant 0 : index
    %c0_25 = arith.constant 0 : index
    %49 = vector.load %arg5[%c0_24, %c0_25] : memref<128x896xbf16, #tpu.memory_space<vmem>>, vector<128x384xbf16>
    %50 = arith.truncf %48 : vector<16x128xf32> to vector<16x128xbf16>
    %cst_26 = arith.constant dense<0.000000e+00> : vector<16x384xf32>
    %51 = tpu.matmul %50, %49, %cst_26 {dimension_numbers = #tpu.dot_dimension_numbers<[1], [0], [0], [1], [0, 0, 1, 1], [], []>} : vector<16x128xbf16>, vector<128x384xbf16>, vector<16x384xf32> -> vector<16x384xf32>
    %52 = vector.broadcast %14 : vector<1x384xf32> to vector<16x384xf32>
    %53 = arith.addf %51, %52 : vector<16x384xf32>
    %54 = vector.shape_cast %53 : vector<16x384xf32> to vector<2x8x384xf32>
    %55 = vector.extract_strided_slice %54 {offsets = [0, 0, 0], sizes = [2, 1, 128], strides = [1, 1, 1]} : vector<2x8x384xf32> to vector<2x1x128xf32>
    %56 = vector.shape_cast %55 : vector<2x1x128xf32> to vector<2x128xf32>
    %57 = vector.extract_strided_slice %54 {offsets = [0, 0, 128], sizes = [2, 8, 128], strides = [1, 1, 1]} : vector<2x8x384xf32> to vector<2x8x128xf32>
    %58 = vector.extract_strided_slice %54 {offsets = [0, 0, 256], sizes = [2, 8, 128], strides = [1, 1, 1]} : vector<2x8x384xf32> to vector<2x8x128xf32>
    %59 = vector.extract_strided_slice %56 {offsets = [0, 0], sizes = [2, 32], strides = [1, 1]} : vector<2x128xf32> to vector<2x32xf32>
    %60 = vector.shape_cast %59 : vector<2x32xf32> to vector<2x1x32xf32>
    %61 = vector.extract_strided_slice %57 {offsets = [0, 0, 0], sizes = [2, 8, 32], strides = [1, 1, 1]} : vector<2x8x128xf32> to vector<2x8x32xf32>
    %62 = vector.extract_strided_slice %58 {offsets = [0, 0, 0], sizes = [2, 8, 32], strides = [1, 1, 1]} : vector<2x8x128xf32> to vector<2x8x32xf32>
    "tpu.trace_start"() <{level = 10 : i32, message = "bqd,bkd->bqk"}> : () -> ()
    %cst_27 = arith.constant dense<0.000000e+00> : vector<2x1x8xf32>
    %63 = tpu.matmul %60, %61, %cst_27 {dimension_numbers = #tpu.dot_dimension_numbers<[2], [2], [1], [1], [0, 0, 0, 1, 1, 1], [0], [0]>} : vector<2x1x32xf32>, vector<2x8x32xf32>, vector<2x1x8xf32> -> vector<2x1x8xf32>
    "tpu.trace_stop"() : () -> ()
    %cst_28 = arith.constant 0.176776692 : f32
    %64 = vector.broadcast %cst_28 : f32 to vector<2x1x8xf32>
    %65 = arith.mulf %63, %64 : vector<2x1x8xf32>
    %cst_29 = arith.constant dense<0xFF800000> : vector<2x1xf32>
    %66 = vector.multi_reduction <maximumf>, %65, %cst_29 [2] : vector<2x1x8xf32> to vector<2x1xf32>
    %67 = vector.shape_cast %66 : vector<2x1xf32> to vector<2x1x1xf32>
    %68 = vector.broadcast %67 : vector<2x1x1xf32> to vector<2x1x8xf32>
    %69 = arith.subf %65, %68 : vector<2x1x8xf32>
    %70 = math.exp %69 : vector<2x1x8xf32>
    %cst_30 = arith.constant dense<0.000000e+00> : vector<2x1xf32>
    %71 = vector.multi_reduction <add>, %70, %cst_30 [2] : vector<2x1x8xf32> to vector<2x1xf32>
    %72 = vector.shape_cast %71 : vector<2x1xf32> to vector<2x1x1xf32>
    %73 = tpu.reciprocal %72 {approx = true} : vector<2x1x1xf32> -> vector<2x1x1xf32>
    %74 = vector.broadcast %73 : vector<2x1x1xf32> to vector<2x1x8xf32>
    %75 = arith.mulf %70, %74 : vector<2x1x8xf32>
    "tpu.trace_start"() <{level = 10 : i32, message = "bqk,bkd->bqd"}> : () -> ()
    %cst_31 = arith.constant dense<0.000000e+00> : vector<2x1x32xf32>
    %76 = tpu.matmul %75, %62, %cst_31 {dimension_numbers = #tpu.dot_dimension_numbers<[2], [1], [1], [2], [0, 0, 0, 1, 1, 2], [0], [0]>} : vector<2x1x8xf32>, vector<2x8x32xf32>, vector<2x1x32xf32> -> vector<2x1x32xf32>
    "tpu.trace_stop"() : () -> ()
    %77 = vector.shape_cast %76 : vector<2x1x32xf32> to vector<2x32xf32>
    %78 = vector.extract_strided_slice %56 {offsets = [0, 32], sizes = [2, 32], strides = [1, 1]} : vector<2x128xf32> to vector<2x32xf32>
    %79 = vector.shape_cast %78 : vector<2x32xf32> to vector<2x1x32xf32>
    %80 = vector.extract_strided_slice %57 {offsets = [0, 0, 32], sizes = [2, 8, 32], strides = [1, 1, 1]} : vector<2x8x128xf32> to vector<2x8x32xf32>
    %81 = vector.extract_strided_slice %58 {offsets = [0, 0, 32], sizes = [2, 8, 32], strides = [1, 1, 1]} : vector<2x8x128xf32> to vector<2x8x32xf32>
    "tpu.trace_start"() <{level = 10 : i32, message = "bqd,bkd->bqk"}> : () -> ()
    %cst_32 = arith.constant dense<0.000000e+00> : vector<2x1x8xf32>
    %82 = tpu.matmul %79, %80, %cst_32 {dimension_numbers = #tpu.dot_dimension_numbers<[2], [2], [1], [1], [0, 0, 0, 1, 1, 1], [0], [0]>} : vector<2x1x32xf32>, vector<2x8x32xf32>, vector<2x1x8xf32> -> vector<2x1x8xf32>
    "tpu.trace_stop"() : () -> ()
    %cst_33 = arith.constant 0.176776692 : f32
    %83 = vector.broadcast %cst_33 : f32 to vector<2x1x8xf32>
    %84 = arith.mulf %82, %83 : vector<2x1x8xf32>
    %cst_34 = arith.constant dense<0xFF800000> : vector<2x1xf32>
    %85 = vector.multi_reduction <maximumf>, %84, %cst_34 [2] : vector<2x1x8xf32> to vector<2x1xf32>
    %86 = vector.shape_cast %85 : vector<2x1xf32> to vector<2x1x1xf32>
    %87 = vector.broadcast %86 : vector<2x1x1xf32> to vector<2x1x8xf32>
    %88 = arith.subf %84, %87 : vector<2x1x8xf32>
    %89 = math.exp %88 : vector<2x1x8xf32>
    %cst_35 = arith.constant dense<0.000000e+00> : vector<2x1xf32>
    %90 = vector.multi_reduction <add>, %89, %cst_35 [2] : vector<2x1x8xf32> to vector<2x1xf32>
    %91 = vector.shape_cast %90 : vector<2x1xf32> to vector<2x1x1xf32>
    %92 = tpu.reciprocal %91 {approx = true} : vector<2x1x1xf32> -> vector<2x1x1xf32>
    %93 = vector.broadcast %92 : vector<2x1x1xf32> to vector<2x1x8xf32>
    %94 = arith.mulf %89, %93 : vector<2x1x8xf32>
    "tpu.trace_start"() <{level = 10 : i32, message = "bqk,bkd->bqd"}> : () -> ()
    %cst_36 = arith.constant dense<0.000000e+00> : vector<2x1x32xf32>
    %95 = tpu.matmul %94, %81, %cst_36 {dimension_numbers = #tpu.dot_dimension_numbers<[2], [1], [1], [2], [0, 0, 0, 1, 1, 2], [0], [0]>} : vector<2x1x8xf32>, vector<2x8x32xf32>, vector<2x1x32xf32> -> vector<2x1x32xf32>
    "tpu.trace_stop"() : () -> ()
    %96 = vector.shape_cast %95 : vector<2x1x32xf32> to vector<2x32xf32>
    %97 = vector.extract_strided_slice %56 {offsets = [0, 64], sizes = [2, 32], strides = [1, 1]} : vector<2x128xf32> to vector<2x32xf32>
    %98 = vector.shape_cast %97 : vector<2x32xf32> to vector<2x1x32xf32>
    %99 = vector.extract_strided_slice %57 {offsets = [0, 0, 64], sizes = [2, 8, 32], strides = [1, 1, 1]} : vector<2x8x128xf32> to vector<2x8x32xf32>
    %100 = vector.extract_strided_slice %58 {offsets = [0, 0, 64], sizes = [2, 8, 32], strides = [1, 1, 1]} : vector<2x8x128xf32> to vector<2x8x32xf32>
    "tpu.trace_start"() <{level = 10 : i32, message = "bqd,bkd->bqk"}> : () -> ()
    %cst_37 = arith.constant dense<0.000000e+00> : vector<2x1x8xf32>
    %101 = tpu.matmul %98, %99, %cst_37 {dimension_numbers = #tpu.dot_dimension_numbers<[2], [2], [1], [1], [0, 0, 0, 1, 1, 1], [0], [0]>} : vector<2x1x32xf32>, vector<2x8x32xf32>, vector<2x1x8xf32> -> vector<2x1x8xf32>
    "tpu.trace_stop"() : () -> ()
    %cst_38 = arith.constant 0.176776692 : f32
    %102 = vector.broadcast %cst_38 : f32 to vector<2x1x8xf32>
    %103 = arith.mulf %101, %102 : vector<2x1x8xf32>
    %cst_39 = arith.constant dense<0xFF800000> : vector<2x1xf32>
    %104 = vector.multi_reduction <maximumf>, %103, %cst_39 [2] : vector<2x1x8xf32> to vector<2x1xf32>
    %105 = vector.shape_cast %104 : vector<2x1xf32> to vector<2x1x1xf32>
    %106 = vector.broadcast %105 : vector<2x1x1xf32> to vector<2x1x8xf32>
    %107 = arith.subf %103, %106 : vector<2x1x8xf32>
    %108 = math.exp %107 : vector<2x1x8xf32>
    %cst_40 = arith.constant dense<0.000000e+00> : vector<2x1xf32>
    %109 = vector.multi_reduction <add>, %108, %cst_40 [2] : vector<2x1x8xf32> to vector<2x1xf32>
    %110 = vector.shape_cast %109 : vector<2x1xf32> to vector<2x1x1xf32>
    %111 = tpu.reciprocal %110 {approx = true} : vector<2x1x1xf32> -> vector<2x1x1xf32>
    %112 = vector.broadcast %111 : vector<2x1x1xf32> to vector<2x1x8xf32>
    %113 = arith.mulf %108, %112 : vector<2x1x8xf32>
    "tpu.trace_start"() <{level = 10 : i32, message = "bqk,bkd->bqd"}> : () -> ()
    %cst_41 = arith.constant dense<0.000000e+00> : vector<2x1x32xf32>
    %114 = tpu.matmul %113, %100, %cst_41 {dimension_numbers = #tpu.dot_dimension_numbers<[2], [1], [1], [2], [0, 0, 0, 1, 1, 2], [0], [0]>} : vector<2x1x8xf32>, vector<2x8x32xf32>, vector<2x1x32xf32> -> vector<2x1x32xf32>
    "tpu.trace_stop"() : () -> ()
    %115 = vector.shape_cast %114 : vector<2x1x32xf32> to vector<2x32xf32>
    %116 = vector.extract_strided_slice %56 {offsets = [0, 96], sizes = [2, 32], strides = [1, 1]} : vector<2x128xf32> to vector<2x32xf32>
    %117 = vector.shape_cast %116 : vector<2x32xf32> to vector<2x1x32xf32>
    %118 = vector.extract_strided_slice %57 {offsets = [0, 0, 96], sizes = [2, 8, 32], strides = [1, 1, 1]} : vector<2x8x128xf32> to vector<2x8x32xf32>
    %119 = vector.extract_strided_slice %58 {offsets = [0, 0, 96], sizes = [2, 8, 32], strides = [1, 1, 1]} : vector<2x8x128xf32> to vector<2x8x32xf32>
    "tpu.trace_start"() <{level = 10 : i32, message = "bqd,bkd->bqk"}> : () -> ()
    %cst_42 = arith.constant dense<0.000000e+00> : vector<2x1x8xf32>
    %120 = tpu.matmul %117, %118, %cst_42 {dimension_numbers = #tpu.dot_dimension_numbers<[2], [2], [1], [1], [0, 0, 0, 1, 1, 1], [0], [0]>} : vector<2x1x32xf32>, vector<2x8x32xf32>, vector<2x1x8xf32> -> vector<2x1x8xf32>
    "tpu.trace_stop"() : () -> ()
    %cst_43 = arith.constant 0.176776692 : f32
    %121 = vector.broadcast %cst_43 : f32 to vector<2x1x8xf32>
    %122 = arith.mulf %120, %121 : vector<2x1x8xf32>
    %cst_44 = arith.constant dense<0xFF800000> : vector<2x1xf32>
    %123 = vector.multi_reduction <maximumf>, %122, %cst_44 [2] : vector<2x1x8xf32> to vector<2x1xf32>
    %124 = vector.shape_cast %123 : vector<2x1xf32> to vector<2x1x1xf32>
    %125 = vector.broadcast %124 : vector<2x1x1xf32> to vector<2x1x8xf32>
    %126 = arith.subf %122, %125 : vector<2x1x8xf32>
    %127 = math.exp %126 : vector<2x1x8xf32>
    %cst_45 = arith.constant dense<0.000000e+00> : vector<2x1xf32>
    %128 = vector.multi_reduction <add>, %127, %cst_45 [2] : vector<2x1x8xf32> to vector<2x1xf32>
    %129 = vector.shape_cast %128 : vector<2x1xf32> to vector<2x1x1xf32>
    %130 = tpu.reciprocal %129 {approx = true} : vector<2x1x1xf32> -> vector<2x1x1xf32>
    %131 = vector.broadcast %130 : vector<2x1x1xf32> to vector<2x1x8xf32>
    %132 = arith.mulf %127, %131 : vector<2x1x8xf32>
    "tpu.trace_start"() <{level = 10 : i32, message = "bqk,bkd->bqd"}> : () -> ()
    %cst_46 = arith.constant dense<0.000000e+00> : vector<2x1x32xf32>
    %133 = tpu.matmul %132, %119, %cst_46 {dimension_numbers = #tpu.dot_dimension_numbers<[2], [1], [1], [2], [0, 0, 0, 1, 1, 2], [0], [0]>} : vector<2x1x8xf32>, vector<2x8x32xf32>, vector<2x1x32xf32> -> vector<2x1x32xf32>
    "tpu.trace_stop"() : () -> ()
    %134 = vector.shape_cast %133 : vector<2x1x32xf32> to vector<2x32xf32>
    %135 = tpu.concatenate %77, %96, %115, %134 in 1 : vector<2x32xf32>, vector<2x32xf32>, vector<2x32xf32>, vector<2x32xf32> -> vector<2x128xf32>
    %c0_47 = arith.constant 0 : index
    %c384 = arith.constant 384 : index
    %136 = vector.load %arg5[%c0_47, %c384] : memref<128x896xbf16, #tpu.memory_space<vmem>>, vector<128x128xbf16>
    %137 = arith.truncf %135 : vector<2x128xf32> to vector<2x128xbf16>
    %cst_48 = arith.constant dense<0.000000e+00> : vector<2x128xf32>
    %138 = tpu.matmul %137, %136, %cst_48 {dimension_numbers = #tpu.dot_dimension_numbers<[1], [0], [0], [1], [0, 0, 1, 1], [], []>} : vector<2x128xbf16>, vector<128x128xbf16>, vector<2x128xf32> -> vector<2x128xf32>
    %139 = vector.broadcast %6 : vector<1x128xf32> to vector<2x128xf32>
    %140 = arith.addf %138, %139 : vector<2x128xf32>
    %141 = vector.shape_cast %48 : vector<16x128xf32> to vector<2x8x128xf32>
    %142 = vector.extract_strided_slice %141 {offsets = [0, 0, 0], sizes = [2, 1, 128], strides = [1, 1, 1]} : vector<2x8x128xf32> to vector<2x1x128xf32>
    %143 = vector.shape_cast %142 : vector<2x1x128xf32> to vector<2x128xf32>
    %144 = arith.addf %143, %140 : vector<2x128xf32>
    %cst_49 = arith.constant dense<0.000000e+00> : vector<2xf32>
    %145 = vector.multi_reduction <add>, %144, %cst_49 [1] : vector<2x128xf32> to vector<2xf32>
    %146 = vector.shape_cast %145 : vector<2xf32> to vector<2x1xf32>
    %cst_50 = arith.constant 1.280000e+02 : f32
    %147 = vector.broadcast %cst_50 : f32 to vector<2x1xf32>
    %148 = arith.divf %146, %147 : vector<2x1xf32>
    %149 = vector.broadcast %148 : vector<2x1xf32> to vector<2x128xf32>
    %150 = arith.subf %144, %149 : vector<2x128xf32>
    %151 = arith.mulf %150, %150 : vector<2x128xf32>
    %cst_51 = arith.constant dense<0.000000e+00> : vector<2xf32>
    %152 = vector.multi_reduction <add>, %151, %cst_51 [1] : vector<2x128xf32> to vector<2xf32>
    %153 = vector.shape_cast %152 : vector<2xf32> to vector<2x1xf32>
    %cst_52 = arith.constant 1.280000e+02 : f32
    %154 = vector.broadcast %cst_52 : f32 to vector<2x1xf32>
    %155 = arith.divf %153, %154 : vector<2x1xf32>
    %156 = vector.broadcast %148 : vector<2x1xf32> to vector<2x128xf32>
    %157 = arith.subf %144, %156 : vector<2x128xf32>
    %cst_53 = arith.constant 9.99999996E-13 : f32
    %158 = vector.broadcast %cst_53 : f32 to vector<2x1xf32>
    %159 = arith.addf %155, %158 : vector<2x1xf32>
    %160 = math.rsqrt %159 : vector<2x1xf32>
    %161 = vector.broadcast %160 : vector<2x1xf32> to vector<2x128xf32>
    %162 = arith.mulf %157, %161 : vector<2x128xf32>
    %163 = vector.broadcast %7 : vector<1x128xf32> to vector<2x128xf32>
    %164 = arith.mulf %162, %163 : vector<2x128xf32>
    %165 = vector.broadcast %8 : vector<1x128xf32> to vector<2x128xf32>
    %166 = arith.addf %164, %165 : vector<2x128xf32>
    %c0_54 = arith.constant 0 : index
    %c512 = arith.constant 512 : index
    %167 = vector.load %arg5[%c0_54, %c512] : memref<128x896xbf16, #tpu.memory_space<vmem>>, vector<128x256xbf16>
    %168 = arith.truncf %166 : vector<2x128xf32> to vector<2x128xbf16>
    %cst_55 = arith.constant dense<0.000000e+00> : vector<2x256xf32>
    %169 = tpu.matmul %168, %167, %cst_55 {dimension_numbers = #tpu.dot_dimension_numbers<[1], [0], [0], [1], [0, 0, 1, 1], [], []>} : vector<2x128xbf16>, vector<128x256xbf16>, vector<2x256xf32> -> vector<2x256xf32>
    %170 = vector.broadcast %15 : vector<1x256xf32> to vector<2x256xf32>
    %171 = arith.addf %169, %170 : vector<2x256xf32>
    %172 = arith.mulf %171, %171 : vector<2x256xf32>
    %173 = arith.mulf %171, %172 : vector<2x256xf32>
    %cst_56 = arith.constant 4.471500e-02 : f32
    %174 = vector.broadcast %cst_56 : f32 to vector<2x256xf32>
    %175 = arith.mulf %174, %173 : vector<2x256xf32>
    %176 = arith.addf %171, %175 : vector<2x256xf32>
    %cst_57 = arith.constant 0.797884583 : f32
    %177 = vector.broadcast %cst_57 : f32 to vector<2x256xf32>
    %178 = arith.mulf %177, %176 : vector<2x256xf32>
    %179 = math.tanh %178 : vector<2x256xf32>
    %cst_58 = arith.constant 1.000000e+00 : f32
    %180 = vector.broadcast %cst_58 : f32 to vector<2x256xf32>
    %181 = arith.addf %180, %179 : vector<2x256xf32>
    %cst_59 = arith.constant 5.000000e-01 : f32
    %182 = vector.broadcast %cst_59 : f32 to vector<2x256xf32>
    %183 = arith.mulf %182, %181 : vector<2x256xf32>
    %184 = arith.mulf %171, %183 : vector<2x256xf32>
    %c0_60 = arith.constant 0 : index
    %c0_61 = arith.constant 0 : index
    %185 = vector.load %arg6[%c0_60, %c0_61] : memref<256x128xbf16, #tpu.memory_space<vmem>>, vector<256x128xbf16>
    %186 = arith.truncf %184 : vector<2x256xf32> to vector<2x256xbf16>
    %cst_62 = arith.constant dense<0.000000e+00> : vector<2x128xf32>
    %187 = tpu.matmul %186, %185, %cst_62 {dimension_numbers = #tpu.dot_dimension_numbers<[1], [0], [0], [1], [0, 0, 1, 1], [], []>} : vector<2x256xbf16>, vector<256x128xbf16>, vector<2x128xf32> -> vector<2x128xf32>
    %188 = vector.broadcast %9 : vector<1x128xf32> to vector<2x128xf32>
    %189 = arith.addf %187, %188 : vector<2x128xf32>
    %190 = arith.addf %166, %189 : vector<2x128xf32>
    %cst_63 = arith.constant dense<0.000000e+00> : vector<2xf32>
    %191 = vector.multi_reduction <add>, %190, %cst_63 [1] : vector<2x128xf32> to vector<2xf32>
    %192 = vector.shape_cast %191 : vector<2xf32> to vector<2x1xf32>
    %cst_64 = arith.constant 1.280000e+02 : f32
    %193 = vector.broadcast %cst_64 : f32 to vector<2x1xf32>
    %194 = arith.divf %192, %193 : vector<2x1xf32>
    %195 = vector.broadcast %194 : vector<2x1xf32> to vector<2x128xf32>
    %196 = arith.subf %190, %195 : vector<2x128xf32>
    %197 = arith.mulf %196, %196 : vector<2x128xf32>
    %cst_65 = arith.constant dense<0.000000e+00> : vector<2xf32>
    %198 = vector.multi_reduction <add>, %197, %cst_65 [1] : vector<2x128xf32> to vector<2xf32>
    %199 = vector.shape_cast %198 : vector<2xf32> to vector<2x1xf32>
    %cst_66 = arith.constant 1.280000e+02 : f32
    %200 = vector.broadcast %cst_66 : f32 to vector<2x1xf32>
    %201 = arith.divf %199, %200 : vector<2x1xf32>
    %202 = vector.broadcast %194 : vector<2x1xf32> to vector<2x128xf32>
    %203 = arith.subf %190, %202 : vector<2x128xf32>
    %cst_67 = arith.constant 9.99999996E-13 : f32
    %204 = vector.broadcast %cst_67 : f32 to vector<2x1xf32>
    %205 = arith.addf %201, %204 : vector<2x1xf32>
    %206 = math.rsqrt %205 : vector<2x1xf32>
    %207 = vector.broadcast %206 : vector<2x1xf32> to vector<2x128xf32>
    %208 = arith.mulf %203, %207 : vector<2x128xf32>
    %209 = vector.broadcast %10 : vector<1x128xf32> to vector<2x128xf32>
    %210 = arith.mulf %208, %209 : vector<2x128xf32>
    %211 = vector.broadcast %11 : vector<1x128xf32> to vector<2x128xf32>
    %212 = arith.addf %210, %211 : vector<2x128xf32>
    %213 = vector.extract_strided_slice %1 {offsets = [0, 0], sizes = [2, 1], strides = [1, 1]} : vector<2x2xf32> to vector<2x1xf32>
    %214 = vector.extract_strided_slice %12 {offsets = [0, 0], sizes = [1, 128], strides = [1, 1]} : vector<2x128xf32> to vector<1x128xf32>
    %215 = vector.broadcast %213 : vector<2x1xf32> to vector<2x128xf32>
    %216 = vector.broadcast %214 : vector<1x128xf32> to vector<2x128xf32>
    %217 = arith.mulf %215, %216 : vector<2x128xf32>
    %218 = vector.broadcast %13 : vector<1x128xf32> to vector<2x128xf32>
    %219 = arith.addf %218, %217 : vector<2x128xf32>
    %220 = vector.extract_strided_slice %1 {offsets = [0, 1], sizes = [2, 1], strides = [1, 1]} : vector<2x2xf32> to vector<2x1xf32>
    %221 = vector.extract_strided_slice %12 {offsets = [1, 0], sizes = [1, 128], strides = [1, 1]} : vector<2x128xf32> to vector<1x128xf32>
    %222 = vector.broadcast %220 : vector<2x1xf32> to vector<2x128xf32>
    %223 = vector.broadcast %221 : vector<1x128xf32> to vector<2x128xf32>
    %224 = arith.mulf %222, %223 : vector<2x128xf32>
    %225 = arith.addf %219, %224 : vector<2x128xf32>
    %c0_68 = arith.constant 0 : index
    %c768 = arith.constant 768 : index
    %226 = vector.load %arg5[%c0_68, %c768] : memref<128x896xbf16, #tpu.memory_space<vmem>>, vector<128x128xbf16>
    %227 = arith.truncf %212 : vector<2x128xf32> to vector<2x128xbf16>
    %cst_69 = arith.constant dense<0.000000e+00> : vector<2x128xf32>
    %228 = tpu.matmul %227, %226, %cst_69 {dimension_numbers = #tpu.dot_dimension_numbers<[1], [0], [0], [1], [0, 0, 1, 1], [], []>} : vector<2x128xbf16>, vector<128x128xbf16>, vector<2x128xf32> -> vector<2x128xf32>
    %229 = arith.addf %228, %225 : vector<2x128xf32>
    %230 = vector.extract_strided_slice %229 {offsets = [0, 0], sizes = [2, 3], strides = [1, 1]} : vector<2x128xf32> to vector<2x3xf32>
    %c0_70 = arith.constant 0 : index
    %c0_71 = arith.constant 0 : index
    %231 = vector.load %arg7[%c0_70, %c0_71] : memref<2x3xf32, #tpu.memory_space<vmem>>, vector<2x3xf32>
    tpu.vector_store %arg7[%c0_70, %c0_71], %230 {strides = array<i32>} : memref<2x3xf32, #tpu.memory_space<vmem>>, vector<2x3xf32>,
    return
  }
  func.func @transform_0(%arg0: i32) -> (i32, i32) {
    %c0_i32 = arith.constant 0 : i32
    %c0_i32_0 = arith.constant 0 : i32
    %c0_i32_1 = arith.constant 0 : i32
    return %c0_i32, %c0_i32_0 : i32, i32
  }
  func.func @transform_1(%arg0: i32) -> (i32, i32) {
    %c0_i32 = arith.constant 0 : i32
    %c0_i32_0 = arith.constant 0 : i32
    %c0_i32_1 = arith.constant 0 : i32
    return %c0_i32, %c0_i32_0 : i32, i32
  }
  func.func @transform_2(%arg0: i32) -> (i32, i32) {
    %c0_i32 = arith.constant 0 : i32
    %c0_i32_0 = arith.constant 0 : i32
    %c0_i32_1 = arith.constant 0 : i32
    return %c0_i32, %c0_i32_0 : i32, i32
  }
  func.func @transform_3(%arg0: i32) -> (i32, i32) {
    %c0_i32 = arith.constant 0 : i32
    %c0_i32_0 = arith.constant 0 : i32
    %c0_i32_1 = arith.constant 0 : i32
    return %c0_i32, %c0_i32_0 : i32, i32
  }
  func.func @transform_4(%arg0: i32) -> (i32, i32) {
    %c0_i32 = arith.constant 0 : i32
    %c0_i32_0 = arith.constant 0 : i32
    %c0_i32_1 = arith.constant 0 : i32
    return %c0_i32, %c0_i32_0 : i32, i32
  }
  func.func @transform_5(%arg0: i32) -> (i32, i32) {
    %c0_i32 = arith.constant 0 : i32
    %c0_i32_0 = arith.constant 0 : i32
    %c0_i32_1 = arith.constant 0 : i32
    return %c0_i32, %c0_i32_0 : i32, i32
  }
  func.func @transform_6(%arg0: i32) -> (i32, i32) {
    %c0_i32 = arith.constant 0 : i32
    %c0_i32_0 = arith.constant 0 : i32
    %c0_i32_1 = arith.constant 0 : i32
    return %c0_i32, %c0_i32_0 : i32, i32
  }
}

</mosaic_0001>

<llo_original>
// kernel: tpu_custom_call.1
$region0: #{tpu_custom_call.1}
  #allocation0 [shape = 'u32[]', space=smem, size = 0x4, offset = 0x4, fixed_abs, tag = 'smem constant byte address 0x4 - core index']
  #allocation1 [shape = 'u32[144,128]{1,0:T(1,128)}', space=vmem, size = 0x12000, scoped, tag = 'internal scratch']
  %s0 = inlined_call_operand.vmem [shape: s32[16,1], index: 0, kind: input, shape index: {}]
  %s1 = inlined_call_operand.vmem [shape: f32[2,2], index: 1, kind: input, shape index: {}]
  %s2 = inlined_call_operand.hbm [shape: f32[83,128], index: 2, kind: input, shape index: {}]
  %s3 = inlined_call_operand.vmem [shape: f32[2,384], index: 3, kind: input, shape index: {}]
  %s4 = inlined_call_operand.hbm [shape: bf16[128,896], index: 4, kind: input, shape index: {}]
  %s5 = inlined_call_operand.hbm [shape: bf16[256,128], index: 5, kind: input, shape index: {}]
  %s6 = inlined_call_operand.hbm [shape: f32[2,3], index: 6, kind: output, shape index: {}]
  %s7 = sld [smem:[#allocation0]]
  $region46: #{tpu_custom_call.1} parent=0
    _
  %s9 = ssub.s32 1, %s7
  %s10 = scalar_select 0, %s9, %s7
  $region1: #{tpu_custom_call.1} parent=0
    #allocation2 [shape = 'u8[45056]{0}', space=vmem, size = 0xb000, scoped, tag = 'input window, operand 2, single buffered']
    #allocation3 [shape = 's32[1]{0}', space=sflag, size = 0x4, scoped, tag = 'scoped memory for tpu_custom_call.1']
    #allocation4 [shape = 's32[1]{0}', space=sflag, size = 0x4, scoped, tag = 'scoped memory for tpu_custom_call.1']
    #allocation5 [shape = 'u8[229376]{0}', space=vmem, size = 0x38000, scoped, tag = 'input window, operand 4, single buffered']
    #allocation6 [shape = 's32[1]{0}', space=sflag, size = 0x4, scoped, tag = 'scoped memory for tpu_custom_call.1']
    #allocation7 [shape = 'u8[65536]{0}', space=vmem, size = 0x10000, scoped, tag = 'input window, operand 5, single buffered']
    #allocation8 [shape = 'u8[1024]{0}', space=vmem, size = 0x400, scoped, tag = 'output window, operand 0, single buffered']
    %11 = vsyncpa [#allocation3], 0
    %12 = vsyncpa [#allocation6], 0
    %13 = vsyncpa [#allocation4], 0
    // Predicated region
    $region2: #{tpu_custom_call.1} parent=1 // pred_check
      _
    $region3: #{tpu_custom_call.1} parent=1 // pred_check_branch
      %15 = sbr.rel (0) target = $region5
    $region4: #{tpu_custom_call.1} parent=1 // pred_region
      _
    $region5: #{tpu_custom_call.1} parent=1 // pred_fallthru
      _
    // Predicated region
    $region6: #{tpu_custom_call.1} parent=1 // pred_check
      _
    $region7: #{tpu_custom_call.1} parent=1 // pred_check_branch
      %17 = sbr.rel (0) target = $region9
    $region8: #{tpu_custom_call.1} parent=1 // pred_region
      _
    $region9: #{tpu_custom_call.1} parent=1 // pred_fallthru
      _
    // Predicated region
    $region10: #{tpu_custom_call.1} parent=1 // pred_check
      _
    $region11: #{tpu_custom_call.1} parent=1 // pred_check_branch
      %19 = sbr.rel (0) target = $region13
    $region12: #{tpu_custom_call.1} parent=1 // pred_region
      %s21 = ssub.s32 1408, 1408
      %22 = vsyncadd [#allocation3], %s21
      %s23 = sshll.u32 [#allocation2], 4
      %s24 = int_to_ptr.vmem [resolvable:$true] %s23
      %29 = dma.hbm_to_vmem [thread:$0]  %s2, 1408, %s24, [#allocation3], 128, 128, 8
    $region13: #{tpu_custom_call.1} parent=1 // pred_fallthru
      _
    // Predicated region
    $region14: #{tpu_custom_call.1} parent=1 // pred_check
      _
    $region15: #{tpu_custom_call.1} parent=1 // pred_check_branch
      %31 = sbr.rel (0) target = $region17
    $region16: #{tpu_custom_call.1} parent=1 // pred_region
      _
    $region17: #{tpu_custom_call.1} parent=1 // pred_fallthru
      _
    // Predicated region
    $region18: #{tpu_custom_call.1} parent=1 // pred_check
      _
    $region19: #{tpu_custom_call.1} parent=1 // pred_check_branch
      %33 = sbr.rel (0) target = $region21
    $region20: #{tpu_custom_call.1} parent=1 // pred_region
      %s35 = ssub.s32 7168, 7168
      %36 = vsyncadd [#allocation6], %s35
      %s37 = sshll.u32 [#allocation5], 4
      %s38 = int_to_ptr.vmem [resolvable:$true] %s37
      %43 = dma.hbm_to_vmem [thread:$0]  %s4, 7168, %s38, [#allocation6], 448, 448, 28
    $region21: #{tpu_custom_call.1} parent=1 // pred_fallthru
      _
    // Predicated region
    $region22: #{tpu_custom_call.1} parent=1 // pred_check
      _
    $region23: #{tpu_custom_call.1} parent=1 // pred_check_branch
      %45 = sbr.rel (0) target = $region25
    $region24: #{tpu_custom_call.1} parent=1 // pred_region
      %s47 = ssub.s32 2048, 2048
      %48 = vsyncadd [#allocation6], %s47
      %s49 = sshll.u32 [#allocation7], 4
      %s50 = int_to_ptr.vmem [resolvable:$true] %s49
      %55 = dma.hbm_to_vmem [thread:$0]  %s5, 2048, %s50, [#allocation6], 64, 64, 4
    $region25: #{tpu_custom_call.1} parent=1 // pred_fallthru
      _
    // Predicated region
    $region26: #{tpu_custom_call.1} parent=1 // pred_check
      _
    $region27: #{tpu_custom_call.1} parent=1 // pred_check_branch
      %57 = sbr.rel (0) target = $region29
    $region28: #{tpu_custom_call.1} parent=1 // pred_region
      %58 = dma.done [#allocation3], 1408
    $region29: #{tpu_custom_call.1} parent=1 // pred_fallthru
      _
    // Predicated region
    $region30: #{tpu_custom_call.1} parent=1 // pred_check
      _
    $region31: #{tpu_custom_call.1} parent=1 // pred_check_branch
      %60 = sbr.rel (0) target = $region33
    $region32: #{tpu_custom_call.1} parent=1 // pred_region
      %61 = dma.done [#allocation6], 7168
    $region33: #{tpu_custom_call.1} parent=1 // pred_fallthru
      _
    // Predicated region
    $region34: #{tpu_custom_call.1} parent=1 // pred_check
      _
    $region35: #{tpu_custom_call.1} parent=1 // pred_check_branch
      %63 = sbr.rel (0) target = $region37
    $region36: #{tpu_custom_call.1} parent=1 // pred_region
      %64 = dma.done [#allocation6], 2048
    $region37: #{tpu_custom_call.1} parent=1 // pred_fallthru
      _
    %v66 = vld [vmem:[%s0] sm:$0xff]
    %v67 = vld [vmem:[%s0 + $0x8] sm:$0xff]
    %v68 = vld [vmem:[%s1] sm:$0x3]
    %v69 = vld [vmem:[#allocation2] sm:$0xff]
    %v70 = vld [vmem:[#allocation2 + $0x8] sm:$0xff]
    %v71 = vld [vmem:[#allocation2 + $0x10] sm:$0xff]
    %v72 = vld [vmem:[#allocation2 + $0x18] sm:$0xff]
    %v73 = vld [vmem:[#allocation2 + $0x20] sm:$0xff]
    %v74 = vld [vmem:[#allocation2 + $0x28] sm:$0xff]
    %v75 = vld [vmem:[#allocation2 + $0x30] sm:$0xff]
    %v76 = vld [vmem:[#allocation2 + $0x38] sm:$0xff]
    %v77 = vld [vmem:[#allocation2 + $0x40] sm:$0xff]
    %v78 = vld [vmem:[#allocation2 + $0x48] sm:$0x1]
    %v79 = vld [vmem:[#allocation2 + $0x49] sm:$0x1]
    %v80 = vld [vmem:[#allocation2 + $0x4a] sm:$0x1]
    %v81 = vld [vmem:[#allocation2 + $0x4b] sm:$0x1]
    %v82 = vld [vmem:[#allocation2 + $0x4c] sm:$0x1]
    %v83 = vld [vmem:[#allocation2 + $0x4d] sm:$0x1]
    %v84 = vld [vmem:[#allocation2 + $0x4e] sm:$0x1]
    %v85 = vld [vmem:[#allocation2 + $0x4f] sm:$0x1]
    %v86 = vld [vmem:[#allocation2 + $0x50] sm:$0x3]
    %v87 = vld [vmem:[#allocation2 + $0x52] sm:$0x1]
    %v88 = vld [vmem:[%s3] ss:$2 sm:$0x7]
    %s89 = scalar_lea.vmem %s3, 1
    %v90 = vld [vmem:[%s89] ss:$2 sm:$0x3]
    %v91 = vlaneseq
    %v92 = vand.u32 %v91, 127
    %93 = vset.pattern.permute.xlu0 0
    %94 = vperm.xlu0 %93, %v66
    %v95 = vpop.permute.xlu0 %94
    %96 = vset.pattern.permute.xlu0 0
    %97 = vperm.xlu0 %96, %v67
    %v98 = vpop.permute.xlu0 %97
    %vm99 = vcmp.eq.s32.totalorder %v92, %v95
    %vm100 = vcmp.eq.s32.totalorder %v92, %v98
    %v101 = vsel %vm99, 1, 0
    %v102 = vsel %vm100, 1, 0
    %v103 = vcvt.s32.f32 %v101
    %v104 = vcvt.s32.f32 %v102
    %vm105 = vcmask 523264
    %v107 = vsel %vm105, %v103, 0
    %v110 = vsel %vm105, %v104, 0
    %112 = vmatprep.subr.mxu0 0.0
    %113 = vmatpush1.msra.mxu0 %v69
    %114 = vmatprep.subr.mxu0 0.0
    %115 = vmatpush1.msra.mxu0 %v70
    %116 = vmatprep.subr.mxu0 0.0
    %117 = vmatpush1.msra.mxu0 %v71
    %118 = vmatprep.subr.mxu0 0.0
    %119 = vmatpush1.msra.mxu0 %v72
    %120 = vmatprep.subr.mxu0 0.0
    %121 = vmatpush1.msra.mxu0 %v73
    %122 = vmatprep.subr.mxu0 0.0
    %123 = vmatpush1.msra.mxu0 %v74
    %124 = vmatprep.subr.mxu0 0.0
    %125 = vmatpush1.msra.mxu0 %v75
    %126 = vmatprep.subr.mxu0 0.0
    %127 = vmatpush1.msra.mxu0 %v76
    %128 = vmatprep.subr.mxu0 0.0
    %129 = vmatpush1.msra.mxu0 0.0
    %130 = vmatprep.subr.mxu0 0.0
    %131 = vmatpush1.msra.mxu0 0.0
    %132 = vmatprep.subr.mxu0 0.0
    %133 = vmatpush1.msra.mxu0 0.0
    %134 = vmatprep.subr.mxu0 0.0
    %135 = vmatpush1.msra.mxu0 0.0
    %136 = vmatprep.subr.mxu0 0.0
    %137 = vmatpush1.msra.mxu0 0.0
    %138 = vmatprep.subr.mxu0 0.0
    %139 = vmatpush1.msra.mxu0 0.0
    %140 = vmatprep.subr.mxu0 0.0
    %141 = vmatpush1.msra.mxu0 0.0
    %142 = vmatprep.subr.mxu0 0.0
    %143 = vmatpush1.msra.mxu0 0.0
    %144 = vmatprep.subr.mxu0 0.0
    %145 = vmatpush1.msra.mxu0 0.0
    %146 = vmatprep.subr.mxu0 0.0
    %147 = vmatpush1.msra.mxu0 0.0
    %148 = vmatprep.subr.mxu0 0.0
    %149 = vmatpush1.msra.mxu0 0.0
    %150 = vmatprep.subr.mxu0 0.0
    %151 = vmatpush1.msra.mxu0 0.0
    %152 = vmatprep.subr.mxu0 0.0
    %153 = vmatpush1.msra.mxu0 0.0
    %154 = vmatprep.subr.mxu0 0.0
    %155 = vmatpush1.msra.mxu0 0.0
    %156 = vmatprep.subr.mxu0 0.0
    %157 = vmatpush1.msra.mxu0 0.0
    %158 = vmatprep.subr.mxu0 0.0
    %159 = vmatpush1.msra.mxu0 0.0
    %160 = vmatprep.subr.mxu0 0.0
    %161 = vmatpush1.msra.mxu0 0.0
    %162 = vmatprep.subr.mxu0 0.0
    %163 = vmatpush1.msra.mxu0 0.0
    %164 = vmatprep.subr.mxu0 0.0
    %165 = vmatpush1.msra.mxu0 0.0
    %166 = vmatprep.subr.mxu0 0.0
    %167 = vmatpush1.msra.mxu0 0.0
    %168 = vmatprep.subr.mxu0 0.0
    %169 = vmatpush1.msra.mxu0 0.0
    %170 = vmatprep.subr.mxu0 0.0
    %171 = vmatpush1.msra.mxu0 0.0
    %172 = vmatprep.subr.mxu0 0.0
    %173 = vmatpush1.msra.mxu0 0.0
    %174 = vmatprep.subr.mxu0 0.0
    %175 = vmatpush1.msra.mxu0 0.0
    %176 = vmatprep.mubr.f32.mxu0 0.0
    %177 = vmatmul.mubr.f32.gmra.mrb[0].mxu0 %v107
    %v178 = vpop.f32.mrb[0].mxu0
    %v179 = vadd.f32 0.0, %v178
    %v180 = vpop.f32.mrb[0].mxu0
    %181 = vmatprep.mubr.f32.mxu0 0.0
    %182 = vmatmul.mubr.f32.gmra.mrb[0].mxu0 %v110
    %v183 = vpop.f32.mrb[0].mxu0
    %v184 = vadd.f32 0.0, %v183
    %v185 = vpop.f32.mrb[0].mxu0
    %186 = vdwg.mxu0
    %v187 = vadd.f32 %v179, %v77
    %v188 = vadd.f32 %v184, %v77
    %189 = vadd.xlane.f32.xlu0 %v187
    %v190 = vpop.xlane.xlu0 %189
    %191 = vadd.xlane.f32.xlu0 %v188
    %v192 = vpop.xlane.xlu0 %191
    %v193 = vrcp.pop 128.0
    %v194 = vmul.f32 %v190, %v193
    %v195 = vmul.f32 %v192, %v193
    %v196 = vsub.f32 %v187, %v194
    %v197 = vsub.f32 %v188, %v195
    %v198 = vmul.f32 %v196, %v196
    %v199 = vmul.f32 %v197, %v197
    %200 = vadd.xlane.f32.xlu0 %v198
    %v201 = vpop.xlane.xlu0 %200
    %202 = vadd.xlane.f32.xlu0 %v199
    %v203 = vpop.xlane.xlu0 %202
    %v204 = vmul.f32 %v201, %v193
    %v205 = vmul.f32 %v203, %v193
    %v206 = vadd.f32 %v204, 1e-12
    %v207 = vadd.f32 %v205, 1e-12
    %v208 = vrsqrt.pop %v206
    %v209 = vrsqrt.pop %v207
    %v210 = vmul.f32 %v196, %v208
    %v211 = vmul.f32 %v197, %v209
    %v212 = vlaneseq
    %v213 = vshrl.u32 %v212, 7
    %v214 = vsub.s32 0, %v213
    %v215 = vrot.slane %v78, %v214
    %v216 = vmul.f32 %v210, %v215
    %v217 = vmul.f32 %v211, %v215
    %v218 = vlaneseq
    %v219 = vshrl.u32 %v218, 7
    %v220 = vsub.s32 0, %v219
    %v221 = vrot.slane %v79, %v220
    %v222 = vadd.f32 %v216, %v221
    %v223 = vadd.f32 %v217, %v221
    %v224 = vld [vmem:[#allocation5] sm:$0xff]
    %v225 = vld [vmem:[#allocation5 + $0x8] sm:$0xf]
    %v226 = vld [vmem:[#allocation5 + $0x1c] sm:$0xff]
    %v227 = vld [vmem:[#allocation5 + $0x24] sm:$0xf]
    %v228 = vld [vmem:[#allocation5 + $0x38] sm:$0xff]
    %v229 = vld [vmem:[#allocation5 + $0x40] sm:$0xf]
    %v230 = vld [vmem:[#allocation5 + $0x54] sm:$0xff]
    %v231 = vld [vmem:[#allocation5 + $0x5c] sm:$0xf]
    %v232 = vld [vmem:[#allocation5 + $0x70] sm:$0xff]
    %v233 = vld [vmem:[#allocation5 + $0x78] sm:$0xf]
    %v234 = vld [vmem:[#allocation5 + $0x8c] sm:$0xff]
    %v235 = vld [vmem:[#allocation5 + $0x94] sm:$0xf]
    %v236 = vld [vmem:[#allocation5 + $0xa8] sm:$0xff]
    %v237 = vld [vmem:[#allocation5 + $0xb0] sm:$0xf]
    %v238 = vld [vmem:[#allocation5 + $0xc4] sm:$0xff]
    %v239 = vld [vmem:[#allocation5 + $0xcc] sm:$0xf]
    %v240 = vld [vmem:[#allocation5 + $0xe0] sm:$0xff]
    %v241 = vld [vmem:[#allocation5 + $0xe8] sm:$0xf]
    %v242 = vld [vmem:[#allocation5 + $0xfc] sm:$0xff]
    %v243 = vld [vmem:[#allocation5 + $0x104] sm:$0xf]
    %v244 = vld [vmem:[#allocation5 + $0x118] sm:$0xff]
    %v245 = vld [vmem:[#allocation5 + $0x120] sm:$0xf]
    %v246 = vld [vmem:[#allocation5 + $0x134] sm:$0xff]
    %v247 = vld [vmem:[#allocation5 + $0x13c] sm:$0xf]
    %v248 = vld [vmem:[#allocation5 + $0x150] sm:$0xff]
    %v249 = vld [vmem:[#allocation5 + $0x158] sm:$0xf]
    %v250 = vld [vmem:[#allocation5 + $0x16c] sm:$0xff]
    %v251 = vld [vmem:[#allocation5 + $0x174] sm:$0xf]
    %v252 = vld [vmem:[#allocation5 + $0x188] sm:$0xff]
    %v253 = vld [vmem:[#allocation5 + $0x190] sm:$0xf]
    %v254 = vld [vmem:[#allocation5 + $0x1a4] sm:$0xff]
    %v255 = vld [vmem:[#allocation5 + $0x1ac] sm:$0xf]
    %v256 = vpack.c.bf16 %v223, %v222
    %v258 = vlaneseq
    %v259 = vshrl.u32 %v258, 7
    %v260 = vsub.s32 0, %v259
    %v261 = vrot.slane %v88, %v260
    %v262 = vlaneseq
    %v263 = vshrl.u32 %v262, 7
    %v264 = vsub.s32 1, %v263
    %v265 = vrot.slane %v88, %v264
    %v266 = vlaneseq
    %v267 = vshrl.u32 %v266, 7
    %v268 = vsub.s32 2, %v267
    %v269 = vrot.slane %v88, %v268
    %v305 = vunpack.c.l.b16 %v224
    %v306 = vunpack.c.h.b16 %v224
    %v307 = vunpack.c.l.b16 %v225
    %v308 = vunpack.c.l.b16 %v226
    %v309 = vunpack.c.h.b16 %v226
    %v310 = vunpack.c.l.b16 %v227
    %v311 = vunpack.c.l.b16 %v228
    %v312 = vunpack.c.h.b16 %v228
    %v313 = vunpack.c.l.b16 %v229
    %v314 = vunpack.c.l.b16 %v230
    %v315 = vunpack.c.h.b16 %v230
    %v316 = vunpack.c.l.b16 %v231
    %v317 = vunpack.c.l.b16 %v232
    %v318 = vunpack.c.h.b16 %v232
    %v319 = vunpack.c.l.b16 %v233
    %v320 = vunpack.c.l.b16 %v234
    %v321 = vunpack.c.h.b16 %v234
    %v322 = vunpack.c.l.b16 %v235
    %v323 = vunpack.c.l.b16 %v236
    %v324 = vunpack.c.h.b16 %v236
    %v325 = vunpack.c.l.b16 %v237
    %v326 = vunpack.c.l.b16 %v238
    %v327 = vunpack.c.h.b16 %v238
    %v328 = vunpack.c.l.b16 %v239
    %v329 = vunpack.c.l.b16 %v240
    %v330 = vunpack.c.h.b16 %v240
    %v331 = vunpack.c.l.b16 %v241
    %v332 = vunpack.c.l.b16 %v242
    %v333 = vunpack.c.h.b16 %v242
    %v334 = vunpack.c.l.b16 %v243
    %v335 = vunpack.c.l.b16 %v244
    %v336 = vunpack.c.h.b16 %v244
    %v337 = vunpack.c.l.b16 %v245
    %v338 = vunpack.c.l.b16 %v246
    %v339 = vunpack.c.h.b16 %v246
    %v340 = vunpack.c.l.b16 %v247
    %v341 = vunpack.c.l.b16 %v248
    %v342 = vunpack.c.h.b16 %v248
    %v343 = vunpack.c.l.b16 %v249
    %v344 = vunpack.c.l.b16 %v250
    %v345 = vunpack.c.h.b16 %v250
    %v346 = vunpack.c.l.b16 %v251
    %v347 = vunpack.c.l.b16 %v252
    %v348 = vunpack.c.h.b16 %v252
    %v349 = vunpack.c.l.b16 %v253
    %v350 = vunpack.c.l.b16 %v254
    %v351 = vunpack.c.h.b16 %v254
    %v352 = vunpack.c.l.b16 %v255
    %v353 = vpack.c.b16 %v308, %v305
    %v354 = vpack.c.b16 %v309, %v306
    %v355 = vpack.c.b16 %v310, %v307
    %v356 = vpack.c.b16 %v314, %v311
    %v357 = vpack.c.b16 %v315, %v312
    %v358 = vpack.c.b16 %v316, %v313
    %v359 = vpack.c.b16 %v320, %v317
    %v360 = vpack.c.b16 %v321, %v318
    %v361 = vpack.c.b16 %v322, %v319
    %v362 = vpack.c.b16 %v326, %v323
    %v363 = vpack.c.b16 %v327, %v324
    %v364 = vpack.c.b16 %v328, %v325
    %v365 = vpack.c.b16 %v332, %v329
    %v366 = vpack.c.b16 %v333, %v330
    %v367 = vpack.c.b16 %v334, %v331
    %v368 = vpack.c.b16 %v338, %v335
    %v369 = vpack.c.b16 %v339, %v336
    %v370 = vpack.c.b16 %v340, %v337
    %v371 = vpack.c.b16 %v344, %v341
    %v372 = vpack.c.b16 %v345, %v342
    %v373 = vpack.c.b16 %v346, %v343
    %v374 = vpack.c.b16 %v350, %v347
    %v375 = vpack.c.b16 %v351, %v348
    %v376 = vpack.c.b16 %v352, %v349
    %401 = vmatprep.subr.bf16.mxu0 %v354
    %402 = vmatpush1.bf16.msra.mxu0 %v353
    %403 = vmatprep.subr.bf16.mxu0 %v357
    %404 = vmatpush1.bf16.msra.mxu0 %v356
    %405 = vmatprep.subr.bf16.mxu0 %v360
    %406 = vmatpush1.bf16.msra.mxu0 %v359
    %407 = vmatprep.subr.bf16.mxu0 %v363
    %408 = vmatpush1.bf16.msra.mxu0 %v362
    %409 = vmatprep.subr.bf16.mxu0 %v366
    %410 = vmatpush1.bf16.msra.mxu0 %v365
    %411 = vmatprep.subr.bf16.mxu0 %v369
    %412 = vmatpush1.bf16.msra.mxu0 %v368
    %413 = vmatprep.subr.bf16.mxu0 %v372
    %414 = vmatpush1.bf16.msra.mxu0 %v371
    %415 = vmatprep.subr.bf16.mxu0 %v375
    %416 = vmatpush1.bf16.msra.mxu0 %v374
    %417 = vmatprep.subr.bf16.mxu0 0
    %418 = vmatpush1.bf16.msra.mxu0 0
    %419 = vmatprep.subr.bf16.mxu0 0
    %420 = vmatpush1.bf16.msra.mxu0 0
    %421 = vmatprep.subr.bf16.mxu0 0
    %422 = vmatpush1.bf16.msra.mxu0 0
    %423 = vmatprep.subr.bf16.mxu0 0
    %424 = vmatpush1.bf16.msra.mxu0 0
    %425 = vmatprep.subr.bf16.mxu0 0
    %426 = vmatpush1.bf16.msra.mxu0 0
    %427 = vmatprep.subr.bf16.mxu0 0
    %428 = vmatpush1.bf16.msra.mxu0 0
    %429 = vmatprep.subr.bf16.mxu0 0
    %430 = vmatpush1.bf16.msra.mxu0 0
    %431 = vmatprep.subr.bf16.mxu0 0
    %432 = vmatpush1.bf16.msra.mxu0 0
    %433 = vmatprep.mubr.bf16.mxu0 0
    %434 = vmatmul.mubr.bf16.gmra.mrb[0].mxu0 %v256
    %v435 = vpop.f32.mrb[0].mxu0
    %v436 = vadd.f32 %v261, %v435
    %v437 = vpop.f32.mrb[0].mxu0
    %v438 = vadd.f32 %v265, %v437
    %v439 = vpop.f32.mrb[0].mxu0
    %v440 = vadd.f32 %v261, %v439
    %v441 = vpop.f32.mrb[0].mxu0
    %v442 = vadd.f32 %v265, %v441
    %443 = vdwg.mxu0
    %444 = vmatprep.subr.bf16.mxu0 0
    %445 = vmatpush1.bf16.msra.mxu0 %v355
    %446 = vmatprep.subr.bf16.mxu0 0
    %447 = vmatpush1.bf16.msra.mxu0 %v358
    %448 = vmatprep.subr.bf16.mxu0 0
    %449 = vmatpush1.bf16.msra.mxu0 %v361
    %450 = vmatprep.subr.bf16.mxu0 0
    %451 = vmatpush1.bf16.msra.mxu0 %v364
    %452 = vmatprep.subr.bf16.mxu0 0
    %453 = vmatpush1.bf16.msra.mxu0 %v367
    %454 = vmatprep.subr.bf16.mxu0 0
    %455 = vmatpush1.bf16.msra.mxu0 %v370
    %456 = vmatprep.subr.bf16.mxu0 0
    %457 = vmatpush1.bf16.msra.mxu0 %v373
    %458 = vmatprep.subr.bf16.mxu0 0
    %459 = vmatpush1.bf16.msra.mxu0 %v376
    %460 = vmatprep.subr.bf16.mxu0 0
    %461 = vmatpush1.bf16.msra.mxu0 0
    %462 = vmatprep.subr.bf16.mxu0 0
    %463 = vmatpush1.bf16.msra.mxu0 0
    %464 = vmatprep.subr.bf16.mxu0 0
    %465 = vmatpush1.bf16.msra.mxu0 0
    %466 = vmatprep.subr.bf16.mxu0 0
    %467 = vmatpush1.bf16.msra.mxu0 0
    %468 = vmatprep.subr.bf16.mxu0 0
    %469 = vmatpush1.bf16.msra.mxu0 0
    %470 = vmatprep.subr.bf16.mxu0 0
    %471 = vmatpush1.bf16.msra.mxu0 0
    %472 = vmatprep.subr.bf16.mxu0 0
    %473 = vmatpush1.bf16.msra.mxu0 0
    %474 = vmatprep.subr.bf16.mxu0 0
    %475 = vmatpush1.bf16.msra.mxu0 0
    %476 = vmatprep.mubr.bf16.mxu0 0
    %477 = vmatmul.mubr.bf16.gmra.mrb[0].mxu0 %v256
    %v478 = vpop.f32.mrb[0].mxu0
    %v479 = vadd.f32 %v269, %v478
    %v480 = vpop.f32.mrb[0].mxu0
    %v481 = vpop.f32.mrb[0].mxu0
    %v482 = vadd.f32 %v269, %v481
    %v483 = vpop.f32.mrb[0].mxu0
    %484 = vdwg.mxu0
    %vm485 = vcmask 261120
    %v487 = vsel %vm485, %v436, 0
    %v490 = vsel %vm485, %v438, 0
    %492 = vmatprep.subr.mxu0 0.0
    %493 = vmatpush1.xpose.msra.mxu0 %v490
    %494 = vmatprep.subr.mxu0 0.0
    %495 = vmatpush1.xpose.msra.mxu0 0.0
    %496 = vmatprep.subr.mxu0 0.0
    %497 = vmatpush1.xpose.msra.mxu0 0.0
    %498 = vmatprep.subr.mxu0 0.0
    %499 = vmatpush1.xpose.msra.mxu0 0.0
    %500 = vmatprep.subr.mxu0 0.0
    %501 = vmatpush1.xpose.msra.mxu0 0.0
    %502 = vmatprep.subr.mxu0 0.0
    %503 = vmatpush1.xpose.msra.mxu0 0.0
    %504 = vmatprep.subr.mxu0 0.0
    %505 = vmatpush1.xpose.msra.mxu0 0.0
    %506 = vmatprep.subr.mxu0 0.0
    %507 = vmatpush1.xpose.msra.mxu0 0.0
    %508 = vmatprep.subr.mxu0 0.0
    %509 = vmatpush1.xpose.msra.mxu0 0.0
    %510 = vmatprep.subr.mxu0 0.0
    %511 = vmatpush1.xpose.msra.mxu0 0.0
    %512 = vmatprep.subr.mxu0 0.0
    %513 = vmatpush1.xpose.msra.mxu0 0.0
    %514 = vmatprep.subr.mxu0 0.0
    %515 = vmatpush1.xpose.msra.mxu0 0.0
    %516 = vmatprep.subr.mxu0 0.0
    %517 = vmatpush1.xpose.msra.mxu0 0.0
    %518 = vmatprep.subr.mxu0 0.0
    %519 = vmatpush1.xpose.msra.mxu0 0.0
    %520 = vmatprep.subr.mxu0 0.0
    %521 = vmatpush1.xpose.msra.mxu0 0.0
    %522 = vmatprep.subr.mxu0 0.0
    %523 = vmatpush1.xpose.msra.mxu0 0.0
    %524 = vmatprep.subr.mxu0 0.0
    %525 = vmatpush1.xpose.msra.mxu0 0.0
    %526 = vmatprep.subr.mxu0 0.0
    %527 = vmatpush1.xpose.msra.mxu0 0.0
    %528 = vmatprep.subr.mxu0 0.0
    %529 = vmatpush1.xpose.msra.mxu0 0.0
    %530 = vmatprep.subr.mxu0 0.0
    %531 = vmatpush1.xpose.msra.mxu0 0.0
    %532 = vmatprep.subr.mxu0 0.0
    %533 = vmatpush1.xpose.msra.mxu0 0.0
    %534 = vmatprep.subr.mxu0 0.0
    %535 = vmatpush1.xpose.msra.mxu0 0.0
    %536 = vmatprep.subr.mxu0 0.0
    %537 = vmatpush1.xpose.msra.mxu0 0.0
    %538 = vmatprep.subr.mxu0 0.0
    %539 = vmatpush1.xpose.msra.mxu0 0.0
    %540 = vmatprep.subr.mxu0 0.0
    %541 = vmatpush1.xpose.msra.mxu0 0.0
    %542 = vmatprep.subr.mxu0 0.0
    %543 = vmatpush1.xpose.msra.mxu0 0.0
    %544 = vmatprep.subr.mxu0 0.0
    %545 = vmatpush1.xpose.msra.mxu0 0.0
    %546 = vmatprep.subr.mxu0 0.0
    %547 = vmatpush1.xpose.msra.mxu0 0.0
    %548 = vmatprep.subr.mxu0 0.0
    %549 = vmatpush1.xpose.msra.mxu0 0.0
    %550 = vmatprep.subr.mxu0 0.0
    %551 = vmatpush1.xpose.msra.mxu0 0.0
    %552 = vmatprep.subr.mxu0 0.0
    %553 = vmatpush1.xpose.msra.mxu0 0.0
    %554 = vmatprep.subr.mxu0 0.0
    %555 = vmatpush1.xpose.msra.mxu0 0.0
    %556 = vmatprep.mubr.f32.mxu0 0.0
    %557 = vmatmul.mubr.f32.gmra.mrb[0].mxu0 %v487
    %v558 = vpop.f32.mrb[0].mxu0
    %v559 = vadd.f32 0.0, %v558
    %v560 = vpop.f32.mrb[0].mxu0
    %561 = vdwg.mxu0
    %v563 = vsel %vm485, %v440, 0
    %v566 = vsel %vm485, %v442, 0
    %568 = vmatprep.subr.mxu0 0.0
    %569 = vmatpush1.xpose.msra.mxu0 %v566
    %570 = vmatprep.subr.mxu0 0.0
    %571 = vmatpush1.xpose.msra.mxu0 0.0
    %572 = vmatprep.subr.mxu0 0.0
    %573 = vmatpush1.xpose.msra.mxu0 0.0
    %574 = vmatprep.subr.mxu0 0.0
    %575 = vmatpush1.xpose.msra.mxu0 0.0
    %576 = vmatprep.subr.mxu0 0.0
    %577 = vmatpush1.xpose.msra.mxu0 0.0
    %578 = vmatprep.subr.mxu0 0.0
    %579 = vmatpush1.xpose.msra.mxu0 0.0
    %580 = vmatprep.subr.mxu0 0.0
    %581 = vmatpush1.xpose.msra.mxu0 0.0
    %582 = vmatprep.subr.mxu0 0.0
    %583 = vmatpush1.xpose.msra.mxu0 0.0
    %584 = vmatprep.subr.mxu0 0.0
    %585 = vmatpush1.xpose.msra.mxu0 0.0
    %586 = vmatprep.subr.mxu0 0.0
    %587 = vmatpush1.xpose.msra.mxu0 0.0
    %588 = vmatprep.subr.mxu0 0.0
    %589 = vmatpush1.xpose.msra.mxu0 0.0
    %590 = vmatprep.subr.mxu0 0.0
    %591 = vmatpush1.xpose.msra.mxu0 0.0
    %592 = vmatprep.subr.mxu0 0.0
    %593 = vmatpush1.xpose.msra.mxu0 0.0
    %594 = vmatprep.subr.mxu0 0.0
    %595 = vmatpush1.xpose.msra.mxu0 0.0
    %596 = vmatprep.subr.mxu0 0.0
    %597 = vmatpush1.xpose.msra.mxu0 0.0
    %598 = vmatprep.subr.mxu0 0.0
    %599 = vmatpush1.xpose.msra.mxu0 0.0
    %600 = vmatprep.subr.mxu0 0.0
    %601 = vmatpush1.xpose.msra.mxu0 0.0
    %602 = vmatprep.subr.mxu0 0.0
    %603 = vmatpush1.xpose.msra.mxu0 0.0
    %604 = vmatprep.subr.mxu0 0.0
    %605 = vmatpush1.xpose.msra.mxu0 0.0
    %606 = vmatprep.subr.mxu0 0.0
    %607 = vmatpush1.xpose.msra.mxu0 0.0
    %608 = vmatprep.subr.mxu0 0.0
    %609 = vmatpush1.xpose.msra.mxu0 0.0
    %610 = vmatprep.subr.mxu0 0.0
    %611 = vmatpush1.xpose.msra.mxu0 0.0
    %612 = vmatprep.subr.mxu0 0.0
    %613 = vmatpush1.xpose.msra.mxu0 0.0
    %614 = vmatprep.subr.mxu0 0.0
    %615 = vmatpush1.xpose.msra.mxu0 0.0
    %616 = vmatprep.subr.mxu0 0.0
    %617 = vmatpush1.xpose.msra.mxu0 0.0
    %618 = vmatprep.subr.mxu0 0.0
    %619 = vmatpush1.xpose.msra.mxu0 0.0
    %620 = vmatprep.subr.mxu0 0.0
    %621 = vmatpush1.xpose.msra.mxu0 0.0
    %622 = vmatprep.subr.mxu0 0.0
    %623 = vmatpush1.xpose.msra.mxu0 0.0
    %624 = vmatprep.subr.mxu0 0.0
    %625 = vmatpush1.xpose.msra.mxu0 0.0
    %626 = vmatprep.subr.mxu0 0.0
    %627 = vmatpush1.xpose.msra.mxu0 0.0
    %628 = vmatprep.subr.mxu0 0.0
    %629 = vmatpush1.xpose.msra.mxu0 0.0
    %630 = vmatprep.subr.mxu0 0.0
    %631 = vmatpush1.xpose.msra.mxu0 0.0
    %632 = vmatprep.mubr.f32.mxu0 0.0
    %633 = vmatmul.mubr.f32.gmra.mrb[0].mxu0 %v563
    %v634 = vpop.f32.mrb[0].mxu0
    %v635 = vadd.f32 0.0, %v634
    %v636 = vpop.f32.mrb[0].mxu0
    %637 = vdwg.mxu0
    %v638 = vmul.f32 %v559, 0.17677669
    %v639 = vmul.f32 %v635, 0.17677669
    %vm640 = vcmask 57344
    %v641 = vsel %vm640, %v638, -inf
    %642 = vmax.xlane.f32.xlu0 %v641
    %v643 = vpop.xlane.xlu0 %642
    %v644 = vsel %vm640, %v639, -inf
    %645 = vmax.xlane.f32.xlu0 %v644
    %v646 = vpop.xlane.xlu0 %645
    %v647 = vsub.f32 %v638, %v643
    %v648 = vsub.f32 %v639, %v646
    %v649 = vmul.f32 %v647, 1.442695
    %v650 = vpow.pop %v649
    %v651 = vmul.f32 %v648, 1.442695
    %v652 = vpow.pop %v651
    %v653 = vsel %vm640, %v650, 0.0
    %654 = vadd.xlane.f32.xlu0 %v653
    %v655 = vpop.xlane.xlu0 %654
    %v656 = vsel %vm640, %v652, 0.0
    %657 = vadd.xlane.f32.xlu0 %v656
    %v658 = vpop.xlane.xlu0 %657
    %v659 = vrcp.pop %v655
    %v660 = vrcp.pop %v658
    %v661 = vmul.f32 %v650, %v659
    %v662 = vmul.f32 %v652, %v660
    %vm663 = vcmask 64512
    %v665 = vsel %vm663, %v661, 0
    %667 = vmatprep.subr.mxu0 0.0
    %668 = vmatpush1.msra.mxu0 %v479
    %669 = vmatprep.subr.mxu0 0.0
    %670 = vmatpush1.msra.mxu0 0.0
    %671 = vmatprep.subr.mxu0 0.0
    %672 = vmatpush1.msra.mxu0 0.0
    %673 = vmatprep.subr.mxu0 0.0
    %674 = vmatpush1.msra.mxu0 0.0
    %675 = vmatprep.subr.mxu0 0.0
    %676 = vmatpush1.msra.mxu0 0.0
    %677 = vmatprep.subr.mxu0 0.0
    %678 = vmatpush1.msra.mxu0 0.0
    %679 = vmatprep.subr.mxu0 0.0
    %680 = vmatpush1.msra.mxu0 0.0
    %681 = vmatprep.subr.mxu0 0.0
    %682 = vmatpush1.msra.mxu0 0.0
    %683 = vmatprep.subr.mxu0 0.0
    %684 = vmatpush1.msra.mxu0 0.0
    %685 = vmatprep.subr.mxu0 0.0
    %686 = vmatpush1.msra.mxu0 0.0
    %687 = vmatprep.subr.mxu0 0.0
    %688 = vmatpush1.msra.mxu0 0.0
    %689 = vmatprep.subr.mxu0 0.0
    %690 = vmatpush1.msra.mxu0 0.0
    %691 = vmatprep.subr.mxu0 0.0
    %692 = vmatpush1.msra.mxu0 0.0
    %693 = vmatprep.subr.mxu0 0.0
    %694 = vmatpush1.msra.mxu0 0.0
    %695 = vmatprep.subr.mxu0 0.0
    %696 = vmatpush1.msra.mxu0 0.0
    %697 = vmatprep.subr.mxu0 0.0
    %698 = vmatpush1.msra.mxu0 0.0
    %699 = vmatprep.subr.mxu0 0.0
    %700 = vmatpush1.msra.mxu0 0.0
    %701 = vmatprep.subr.mxu0 0.0
    %702 = vmatpush1.msra.mxu0 0.0
    %703 = vmatprep.subr.mxu0 0.0
    %704 = vmatpush1.msra.mxu0 0.0
    %705 = vmatprep.subr.mxu0 0.0
    %706 = vmatpush1.msra.mxu0 0.0
    %707 = vmatprep.subr.mxu0 0.0
    %708 = vmatpush1.msra.mxu0 0.0
    %709 = vmatprep.subr.mxu0 0.0
    %710 = vmatpush1.msra.mxu0 0.0
    %711 = vmatprep.subr.mxu0 0.0
    %712 = vmatpush1.msra.mxu0 0.0
    %713 = vmatprep.subr.mxu0 0.0
    %714 = vmatpush1.msra.mxu0 0.0
    %715 = vmatprep.subr.mxu0 0.0
    %716 = vmatpush1.msra.mxu0 0.0
    %717 = vmatprep.subr.mxu0 0.0
    %718 = vmatpush1.msra.mxu0 0.0
    %719 = vmatprep.subr.mxu0 0.0
    %720 = vmatpush1.msra.mxu0 0.0
    %721 = vmatprep.subr.mxu0 0.0
    %722 = vmatpush1.msra.mxu0 0.0
    %723 = vmatprep.subr.mxu0 0.0
    %724 = vmatpush1.msra.mxu0 0.0
    %725 = vmatprep.subr.mxu0 0.0
    %726 = vmatpush1.msra.mxu0 0.0
    %727 = vmatprep.subr.mxu0 0.0
    %728 = vmatpush1.msra.mxu0 0.0
    %729 = vmatprep.subr.mxu0 0.0
    %730 = vmatpush1.msra.mxu0 0.0
    %731 = vmatprep.mubr.f32.mxu0 0.0
    %732 = vmatmul.mubr.f32.gmra.mrb[0].mxu0 %v665
    %v733 = vpop.f32.mrb[0].mxu0
    %v734 = vadd.f32 0.0, %v733
    %v735 = vpop.f32.mrb[0].mxu0
    %736 = vdwg.mxu0
    %v738 = vsel %vm663, %v662, 0
    %740 = vmatprep.subr.mxu0 0.0
    %741 = vmatpush1.msra.mxu0 %v482
    %742 = vmatprep.subr.mxu0 0.0
    %743 = vmatpush1.msra.mxu0 0.0
    %744 = vmatprep.subr.mxu0 0.0
    %745 = vmatpush1.msra.mxu0 0.0
    %746 = vmatprep.subr.mxu0 0.0
    %747 = vmatpush1.msra.mxu0 0.0
    %748 = vmatprep.subr.mxu0 0.0
    %749 = vmatpush1.msra.mxu0 0.0
    %750 = vmatprep.subr.mxu0 0.0
    %751 = vmatpush1.msra.mxu0 0.0
    %752 = vmatprep.subr.mxu0 0.0
    %753 = vmatpush1.msra.mxu0 0.0
    %754 = vmatprep.subr.mxu0 0.0
    %755 = vmatpush1.msra.mxu0 0.0
    %756 = vmatprep.subr.mxu0 0.0
    %757 = vmatpush1.msra.mxu0 0.0
    %758 = vmatprep.subr.mxu0 0.0
    %759 = vmatpush1.msra.mxu0 0.0
    %760 = vmatprep.subr.mxu0 0.0
    %761 = vmatpush1.msra.mxu0 0.0
    %762 = vmatprep.subr.mxu0 0.0
    %763 = vmatpush1.msra.mxu0 0.0
    %764 = vmatprep.subr.mxu0 0.0
    %765 = vmatpush1.msra.mxu0 0.0
    %766 = vmatprep.subr.mxu0 0.0
    %767 = vmatpush1.msra.mxu0 0.0
    %768 = vmatprep.subr.mxu0 0.0
    %769 = vmatpush1.msra.mxu0 0.0
    %770 = vmatprep.subr.mxu0 0.0
    %771 = vmatpush1.msra.mxu0 0.0
    %772 = vmatprep.subr.mxu0 0.0
    %773 = vmatpush1.msra.mxu0 0.0
    %774 = vmatprep.subr.mxu0 0.0
    %775 = vmatpush1.msra.mxu0 0.0
    %776 = vmatprep.subr.mxu0 0.0
    %777 = vmatpush1.msra.mxu0 0.0
    %778 = vmatprep.subr.mxu0 0.0
    %779 = vmatpush1.msra.mxu0 0.0
    %780 = vmatprep.subr.mxu0 0.0
    %781 = vmatpush1.msra.mxu0 0.0
    %782 = vmatprep.subr.mxu0 0.0
    %783 = vmatpush1.msra.mxu0 0.0
    %784 = vmatprep.subr.mxu0 0.0
    %785 = vmatpush1.msra.mxu0 0.0
    %786 = vmatprep.subr.mxu0 0.0
    %787 = vmatpush1.msra.mxu0 0.0
    %788 = vmatprep.subr.mxu0 0.0
    %789 = vmatpush1.msra.mxu0 0.0
    %790 = vmatprep.subr.mxu0 0.0
    %791 = vmatpush1.msra.mxu0 0.0
    %792 = vmatprep.subr.mxu0 0.0
    %793 = vmatpush1.msra.mxu0 0.0
    %794 = vmatprep.subr.mxu0 0.0
    %795 = vmatpush1.msra.mxu0 0.0
    %796 = vmatprep.subr.mxu0 0.0
    %797 = vmatpush1.msra.mxu0 0.0
    %798 = vmatprep.subr.mxu0 0.0
    %799 = vmatpush1.msra.mxu0 0.0
    %800 = vmatprep.subr.mxu0 0.0
    %801 = vmatpush1.msra.mxu0 0.0
    %802 = vmatprep.subr.mxu0 0.0
    %803 = vmatpush1.msra.mxu0 0.0
    %804 = vmatprep.mubr.f32.mxu0 0.0
    %805 = vmatmul.mubr.f32.gmra.mrb[0].mxu0 %v738
    %v806 = vpop.f32.mrb[0].mxu0
    %v807 = vadd.f32 0.0, %v806
    %v808 = vpop.f32.mrb[0].mxu0
    %809 = vdwg.mxu0
    %810 = vrot.lane.b32.xlu0 %v436, 96
    %v811 = vpop.permute.xlu0 %810
    %812 = vrot.lane.b32.xlu0 %v438, 96
    %v813 = vpop.permute.xlu0 %812
    %v814 = vsel %vm485, %v811, 0
    %v816 = vsel %vm485, %v813, 0
    %818 = vmatprep.subr.mxu0 0.0
    %819 = vmatpush1.xpose.msra.mxu0 %v816
    %820 = vmatprep.subr.mxu0 0.0
    %821 = vmatpush1.xpose.msra.mxu0 0.0
    %822 = vmatprep.subr.mxu0 0.0
    %823 = vmatpush1.xpose.msra.mxu0 0.0
    %824 = vmatprep.subr.mxu0 0.0
    %825 = vmatpush1.xpose.msra.mxu0 0.0
    %826 = vmatprep.subr.mxu0 0.0
    %827 = vmatpush1.xpose.msra.mxu0 0.0
    %828 = vmatprep.subr.mxu0 0.0
    %829 = vmatpush1.xpose.msra.mxu0 0.0
    %830 = vmatprep.subr.mxu0 0.0
    %831 = vmatpush1.xpose.msra.mxu0 0.0
    %832 = vmatprep.subr.mxu0 0.0
    %833 = vmatpush1.xpose.msra.mxu0 0.0
    %834 = vmatprep.subr.mxu0 0.0
    %835 = vmatpush1.xpose.msra.mxu0 0.0
    %836 = vmatprep.subr.mxu0 0.0
    %837 = vmatpush1.xpose.msra.mxu0 0.0
    %838 = vmatprep.subr.mxu0 0.0
    %839 = vmatpush1.xpose.msra.mxu0 0.0
    %840 = vmatprep.subr.mxu0 0.0
    %841 = vmatpush1.xpose.msra.mxu0 0.0
    %842 = vmatprep.subr.mxu0 0.0
    %843 = vmatpush1.xpose.msra.mxu0 0.0
    %844 = vmatprep.subr.mxu0 0.0
    %845 = vmatpush1.xpose.msra.mxu0 0.0
    %846 = vmatprep.subr.mxu0 0.0
    %847 = vmatpush1.xpose.msra.mxu0 0.0
    %848 = vmatprep.subr.mxu0 0.0
    %849 = vmatpush1.xpose.msra.mxu0 0.0
    %850 = vmatprep.subr.mxu0 0.0
    %851 = vmatpush1.xpose.msra.mxu0 0.0
    %852 = vmatprep.subr.mxu0 0.0
    %853 = vmatpush1.xpose.msra.mxu0 0.0
    %854 = vmatprep.subr.mxu0 0.0
    %855 = vmatpush1.xpose.msra.mxu0 0.0
    %856 = vmatprep.subr.mxu0 0.0
    %857 = vmatpush1.xpose.msra.mxu0 0.0
    %858 = vmatprep.subr.mxu0 0.0
    %859 = vmatpush1.xpose.msra.mxu0 0.0
    %860 = vmatprep.subr.mxu0 0.0
    %861 = vmatpush1.xpose.msra.mxu0 0.0
    %862 = vmatprep.subr.mxu0 0.0
    %863 = vmatpush1.xpose.msra.mxu0 0.0
    %864 = vmatprep.subr.mxu0 0.0
    %865 = vmatpush1.xpose.msra.mxu0 0.0
    %866 = vmatprep.subr.mxu0 0.0
    %867 = vmatpush1.xpose.msra.mxu0 0.0
    %868 = vmatprep.subr.mxu0 0.0
    %869 = vmatpush1.xpose.msra.mxu0 0.0
    %870 = vmatprep.subr.mxu0 0.0
    %871 = vmatpush1.xpose.msra.mxu0 0.0
    %872 = vmatprep.subr.mxu0 0.0
    %873 = vmatpush1.xpose.msra.mxu0 0.0
    %874 = vmatprep.subr.mxu0 0.0
    %875 = vmatpush1.xpose.msra.mxu0 0.0
    %876 = vmatprep.subr.mxu0 0.0
    %877 = vmatpush1.xpose.msra.mxu0 0.0
    %878 = vmatprep.subr.mxu0 0.0
    %879 = vmatpush1.xpose.msra.mxu0 0.0
    %880 = vmatprep.subr.mxu0 0.0
    %881 = vmatpush1.xpose.msra.mxu0 0.0
    %882 = vmatprep.mubr.f32.mxu0 0.0
    %883 = vmatmul.mubr.f32.gmra.mrb[0].mxu0 %v814
    %v884 = vpop.f32.mrb[0].mxu0
    %v885 = vadd.f32 0.0, %v884
    %v886 = vpop.f32.mrb[0].mxu0
    %887 = vdwg.mxu0
    %888 = vrot.lane.b32.xlu0 %v440, 96
    %v889 = vpop.permute.xlu0 %888
    %890 = vrot.lane.b32.xlu0 %v442, 96
    %v891 = vpop.permute.xlu0 %890
    %v892 = vsel %vm485, %v889, 0
    %v894 = vsel %vm485, %v891, 0
    %896 = vmatprep.subr.mxu0 0.0
    %897 = vmatpush1.xpose.msra.mxu0 %v894
    %898 = vmatprep.subr.mxu0 0.0
    %899 = vmatpush1.xpose.msra.mxu0 0.0
    %900 = vmatprep.subr.mxu0 0.0
    %901 = vmatpush1.xpose.msra.mxu0 0.0
    %902 = vmatprep.subr.mxu0 0.0
    %903 = vmatpush1.xpose.msra.mxu0 0.0
    %904 = vmatprep.subr.mxu0 0.0
    %905 = vmatpush1.xpose.msra.mxu0 0.0
    %906 = vmatprep.subr.mxu0 0.0
    %907 = vmatpush1.xpose.msra.mxu0 0.0
    %908 = vmatprep.subr.mxu0 0.0
    %909 = vmatpush1.xpose.msra.mxu0 0.0
    %910 = vmatprep.subr.mxu0 0.0
    %911 = vmatpush1.xpose.msra.mxu0 0.0
    %912 = vmatprep.subr.mxu0 0.0
    %913 = vmatpush1.xpose.msra.mxu0 0.0
    %914 = vmatprep.subr.mxu0 0.0
    %915 = vmatpush1.xpose.msra.mxu0 0.0
    %916 = vmatprep.subr.mxu0 0.0
    %917 = vmatpush1.xpose.msra.mxu0 0.0
    %918 = vmatprep.subr.mxu0 0.0
    %919 = vmatpush1.xpose.msra.mxu0 0.0
    %920 = vmatprep.subr.mxu0 0.0
    %921 = vmatpush1.xpose.msra.mxu0 0.0
    %922 = vmatprep.subr.mxu0 0.0
    %923 = vmatpush1.xpose.msra.mxu0 0.0
    %924 = vmatprep.subr.mxu0 0.0
    %925 = vmatpush1.xpose.msra.mxu0 0.0
    %926 = vmatprep.subr.mxu0 0.0
    %927 = vmatpush1.xpose.msra.mxu0 0.0
    %928 = vmatprep.subr.mxu0 0.0
    %929 = vmatpush1.xpose.msra.mxu0 0.0
    %930 = vmatprep.subr.mxu0 0.0
    %931 = vmatpush1.xpose.msra.mxu0 0.0
    %932 = vmatprep.subr.mxu0 0.0
    %933 = vmatpush1.xpose.msra.mxu0 0.0
    %934 = vmatprep.subr.mxu0 0.0
    %935 = vmatpush1.xpose.msra.mxu0 0.0
    %936 = vmatprep.subr.mxu0 0.0
    %937 = vmatpush1.xpose.msra.mxu0 0.0
    %938 = vmatprep.subr.mxu0 0.0
    %939 = vmatpush1.xpose.msra.mxu0 0.0
    %940 = vmatprep.subr.mxu0 0.0
    %941 = vmatpush1.xpose.msra.mxu0 0.0
    %942 = vmatprep.subr.mxu0 0.0
    %943 = vmatpush1.xpose.msra.mxu0 0.0
    %944 = vmatprep.subr.mxu0 0.0
    %945 = vmatpush1.xpose.msra.mxu0 0.0
    %946 = vmatprep.subr.mxu0 0.0
    %947 = vmatpush1.xpose.msra.mxu0 0.0
    %948 = vmatprep.subr.mxu0 0.0
    %949 = vmatpush1.xpose.msra.mxu0 0.0
    %950 = vmatprep.subr.mxu0 0.0
    %951 = vmatpush1.xpose.msra.mxu0 0.0
    %952 = vmatprep.subr.mxu0 0.0
    %953 = vmatpush1.xpose.msra.mxu0 0.0
    %954 = vmatprep.subr.mxu0 0.0
    %955 = vmatpush1.xpose.msra.mxu0 0.0
    %956 = vmatprep.subr.mxu0 0.0
    %957 = vmatpush1.xpose.msra.mxu0 0.0
    %958 = vmatprep.subr.mxu0 0.0
    %959 = vmatpush1.xpose.msra.mxu0 0.0
    %960 = vmatprep.mubr.f32.mxu0 0.0
    %961 = vmatmul.mubr.f32.gmra.mrb[0].mxu0 %v892
    %v962 = vpop.f32.mrb[0].mxu0
    %v963 = vadd.f32 0.0, %v962
    %v964 = vpop.f32.mrb[0].mxu0
    %965 = vdwg.mxu0
    %v966 = vmul.f32 %v885, 0.17677669
    %v967 = vmul.f32 %v963, 0.17677669
    %v968 = vsel %vm640, %v966, -inf
    %969 = vmax.xlane.f32.xlu0 %v968
    %v970 = vpop.xlane.xlu0 %969
    %v971 = vsel %vm640, %v967, -inf
    %972 = vmax.xlane.f32.xlu0 %v971
    %v973 = vpop.xlane.xlu0 %972
    %v974 = vsub.f32 %v966, %v970
    %v975 = vsub.f32 %v967, %v973
    %v976 = vmul.f32 %v974, 1.442695
    %v977 = vpow.pop %v976
    %v978 = vmul.f32 %v975, 1.442695
    %v979 = vpow.pop %v978
    %v980 = vsel %vm640, %v977, 0.0
    %981 = vadd.xlane.f32.xlu0 %v980
    %v982 = vpop.xlane.xlu0 %981
    %v983 = vsel %vm640, %v979, 0.0
    %984 = vadd.xlane.f32.xlu0 %v983
    %v985 = vpop.xlane.xlu0 %984
    %v986 = vrcp.pop %v982
    %v987 = vrcp.pop %v985
    %v988 = vmul.f32 %v977, %v986
    %v989 = vmul.f32 %v979, %v987
    %991 = vrot.lane.b32.xlu0 %v479, 96
    %v992 = vpop.permute.xlu0 %991
    %v995 = vsel %vm663, %v988, 0
    %997 = vmatprep.subr.mxu0 0.0
    %998 = vmatpush1.msra.mxu0 %v992
    %999 = vmatprep.subr.mxu0 0.0
    %1000 = vmatpush1.msra.mxu0 0.0
    %1001 = vmatprep.subr.mxu0 0.0
    %1002 = vmatpush1.msra.mxu0 0.0
    %1003 = vmatprep.subr.mxu0 0.0
    %1004 = vmatpush1.msra.mxu0 0.0
    %1005 = vmatprep.subr.mxu0 0.0
    %1006 = vmatpush1.msra.mxu0 0.0
    %1007 = vmatprep.subr.mxu0 0.0
    %1008 = vmatpush1.msra.mxu0 0.0
    %1009 = vmatprep.subr.mxu0 0.0
    %1010 = vmatpush1.msra.mxu0 0.0
    %1011 = vmatprep.subr.mxu0 0.0
    %1012 = vmatpush1.msra.mxu0 0.0
    %1013 = vmatprep.subr.mxu0 0.0
    %1014 = vmatpush1.msra.mxu0 0.0
    %1015 = vmatprep.subr.mxu0 0.0
    %1016 = vmatpush1.msra.mxu0 0.0
    %1017 = vmatprep.subr.mxu0 0.0
    %1018 = vmatpush1.msra.mxu0 0.0
    %1019 = vmatprep.subr.mxu0 0.0
    %1020 = vmatpush1.msra.mxu0 0.0
    %1021 = vmatprep.subr.mxu0 0.0
    %1022 = vmatpush1.msra.mxu0 0.0
    %1023 = vmatprep.subr.mxu0 0.0
    %1024 = vmatpush1.msra.mxu0 0.0
    %1025 = vmatprep.subr.mxu0 0.0
    %1026 = vmatpush1.msra.mxu0 0.0
    %1027 = vmatprep.subr.mxu0 0.0
    %1028 = vmatpush1.msra.mxu0 0.0
    %1029 = vmatprep.subr.mxu0 0.0
    %1030 = vmatpush1.msra.mxu0 0.0
    %1031 = vmatprep.subr.mxu0 0.0
    %1032 = vmatpush1.msra.mxu0 0.0
    %1033 = vmatprep.subr.mxu0 0.0
    %1034 = vmatpush1.msra.mxu0 0.0
    %1035 = vmatprep.subr.mxu0 0.0
    %1036 = vmatpush1.msra.mxu0 0.0
    %1037 = vmatprep.subr.mxu0 0.0
    %1038 = vmatpush1.msra.mxu0 0.0
    %1039 = vmatprep.subr.mxu0 0.0
    %1040 = vmatpush1.msra.mxu0 0.0
    %1041 = vmatprep.subr.mxu0 0.0
    %1042 = vmatpush1.msra.mxu0 0.0
    %1043 = vmatprep.subr.mxu0 0.0
    %1044 = vmatpush1.msra.mxu0 0.0
    %1045 = vmatprep.subr.mxu0 0.0
    %1046 = vmatpush1.msra.mxu0 0.0
    %1047 = vmatprep.subr.mxu0 0.0
    %1048 = vmatpush1.msra.mxu0 0.0
    %1049 = vmatprep.subr.mxu0 0.0
    %1050 = vmatpush1.msra.mxu0 0.0
    %1051 = vmatprep.subr.mxu0 0.0
    %1052 = vmatpush1.msra.mxu0 0.0
    %1053 = vmatprep.subr.mxu0 0.0
    %1054 = vmatpush1.msra.mxu0 0.0
    %1055 = vmatprep.subr.mxu0 0.0
    %1056 = vmatpush1.msra.mxu0 0.0
    %1057 = vmatprep.subr.mxu0 0.0
    %1058 = vmatpush1.msra.mxu0 0.0
    %1059 = vmatprep.subr.mxu0 0.0
    %1060 = vmatpush1.msra.mxu0 0.0
    %1061 = vmatprep.mubr.f32.mxu0 0.0
    %1062 = vmatmul.mubr.f32.gmra.mrb[0].mxu0 %v995
    %v1063 = vpop.f32.mrb[0].mxu0
    %v1064 = vadd.f32 0.0, %v1063
    %v1065 = vpop.f32.mrb[0].mxu0
    %1066 = vdwg.mxu0
    %1068 = vrot.lane.b32.xlu0 %v482, 96
    %v1069 = vpop.permute.xlu0 %1068
    %v1072 = vsel %vm663, %v989, 0
    %1074 = vmatprep.subr.mxu0 0.0
    %1075 = vmatpush1.msra.mxu0 %v1069
    %1076 = vmatprep.subr.mxu0 0.0
    %1077 = vmatpush1.msra.mxu0 0.0
    %1078 = vmatprep.subr.mxu0 0.0
    %1079 = vmatpush1.msra.mxu0 0.0
    %1080 = vmatprep.subr.mxu0 0.0
    %1081 = vmatpush1.msra.mxu0 0.0
    %1082 = vmatprep.subr.mxu0 0.0
    %1083 = vmatpush1.msra.mxu0 0.0
    %1084 = vmatprep.subr.mxu0 0.0
    %1085 = vmatpush1.msra.mxu0 0.0
    %1086 = vmatprep.subr.mxu0 0.0
    %1087 = vmatpush1.msra.mxu0 0.0
    %1088 = vmatprep.subr.mxu0 0.0
    %1089 = vmatpush1.msra.mxu0 0.0
    %1090 = vmatprep.subr.mxu0 0.0
    %1091 = vmatpush1.msra.mxu0 0.0
    %1092 = vmatprep.subr.mxu0 0.0
    %1093 = vmatpush1.msra.mxu0 0.0
    %1094 = vmatprep.subr.mxu0 0.0
    %1095 = vmatpush1.msra.mxu0 0.0
    %1096 = vmatprep.subr.mxu0 0.0
    %1097 = vmatpush1.msra.mxu0 0.0
    %1098 = vmatprep.subr.mxu0 0.0
    %1099 = vmatpush1.msra.mxu0 0.0
    %1100 = vmatprep.subr.mxu0 0.0
    %1101 = vmatpush1.msra.mxu0 0.0
    %1102 = vmatprep.subr.mxu0 0.0
    %1103 = vmatpush1.msra.mxu0 0.0
    %1104 = vmatprep.subr.mxu0 0.0
    %1105 = vmatpush1.msra.mxu0 0.0
    %1106 = vmatprep.subr.mxu0 0.0
    %1107 = vmatpush1.msra.mxu0 0.0
    %1108 = vmatprep.subr.mxu0 0.0
    %1109 = vmatpush1.msra.mxu0 0.0
    %1110 = vmatprep.subr.mxu0 0.0
    %1111 = vmatpush1.msra.mxu0 0.0
    %1112 = vmatprep.subr.mxu0 0.0
    %1113 = vmatpush1.msra.mxu0 0.0
    %1114 = vmatprep.subr.mxu0 0.0
    %1115 = vmatpush1.msra.mxu0 0.0
    %1116 = vmatprep.subr.mxu0 0.0
    %1117 = vmatpush1.msra.mxu0 0.0
    %1118 = vmatprep.subr.mxu0 0.0
    %1119 = vmatpush1.msra.mxu0 0.0
    %1120 = vmatprep.subr.mxu0 0.0
    %1121 = vmatpush1.msra.mxu0 0.0
    %1122 = vmatprep.subr.mxu0 0.0
    %1123 = vmatpush1.msra.mxu0 0.0
    %1124 = vmatprep.subr.mxu0 0.0
    %1125 = vmatpush1.msra.mxu0 0.0
    %1126 = vmatprep.subr.mxu0 0.0
    %1127 = vmatpush1.msra.mxu0 0.0
    %1128 = vmatprep.subr.mxu0 0.0
    %1129 = vmatpush1.msra.mxu0 0.0
    %1130 = vmatprep.subr.mxu0 0.0
    %1131 = vmatpush1.msra.mxu0 0.0
    %1132 = vmatprep.subr.mxu0 0.0
    %1133 = vmatpush1.msra.mxu0 0.0
    %1134 = vmatprep.subr.mxu0 0.0
    %1135 = vmatpush1.msra.mxu0 0.0
    %1136 = vmatprep.subr.mxu0 0.0
    %1137 = vmatpush1.msra.mxu0 0.0
    %1138 = vmatprep.mubr.f32.mxu0 0.0
    %1139 = vmatmul.mubr.f32.gmra.mrb[0].mxu0 %v1072
    %v1140 = vpop.f32.mrb[0].mxu0
    %v1141 = vadd.f32 0.0, %v1140
    %v1142 = vpop.f32.mrb[0].mxu0
    %1143 = vdwg.mxu0
    %1144 = vrot.lane.b32.xlu0 %v436, 64
    %v1145 = vpop.permute.xlu0 %1144
    %1146 = vrot.lane.b32.xlu0 %v438, 64
    %v1147 = vpop.permute.xlu0 %1146
    %v1148 = vsel %vm485, %v1145, 0
    %v1150 = vsel %vm485, %v1147, 0
    %1152 = vmatprep.subr.mxu0 0.0
    %1153 = vmatpush1.xpose.msra.mxu0 %v1150
    %1154 = vmatprep.subr.mxu0 0.0
    %1155 = vmatpush1.xpose.msra.mxu0 0.0
    %1156 = vmatprep.subr.mxu0 0.0
    %1157 = vmatpush1.xpose.msra.mxu0 0.0
    %1158 = vmatprep.subr.mxu0 0.0
    %1159 = vmatpush1.xpose.msra.mxu0 0.0
    %1160 = vmatprep.subr.mxu0 0.0
    %1161 = vmatpush1.xpose.msra.mxu0 0.0
    %1162 = vmatprep.subr.mxu0 0.0
    %1163 = vmatpush1.xpose.msra.mxu0 0.0
    %1164 = vmatprep.subr.mxu0 0.0
    %1165 = vmatpush1.xpose.msra.mxu0 0.0
    %1166 = vmatprep.subr.mxu0 0.0
    %1167 = vmatpush1.xpose.msra.mxu0 0.0
    %1168 = vmatprep.subr.mxu0 0.0
    %1169 = vmatpush1.xpose.msra.mxu0 0.0
    %1170 = vmatprep.subr.mxu0 0.0
    %1171 = vmatpush1.xpose.msra.mxu0 0.0
    %1172 = vmatprep.subr.mxu0 0.0
    %1173 = vmatpush1.xpose.msra.mxu0 0.0
    %1174 = vmatprep.subr.mxu0 0.0
    %1175 = vmatpush1.xpose.msra.mxu0 0.0
    %1176 = vmatprep.subr.mxu0 0.0
    %1177 = vmatpush1.xpose.msra.mxu0 0.0
    %1178 = vmatprep.subr.mxu0 0.0
    %1179 = vmatpush1.xpose.msra.mxu0 0.0
    %1180 = vmatprep.subr.mxu0 0.0
    %1181 = vmatpush1.xpose.msra.mxu0 0.0
    %1182 = vmatprep.subr.mxu0 0.0
    %1183 = vmatpush1.xpose.msra.mxu0 0.0
    %1184 = vmatprep.subr.mxu0 0.0
    %1185 = vmatpush1.xpose.msra.mxu0 0.0
    %1186 = vmatprep.subr.mxu0 0.0
    %1187 = vmatpush1.xpose.msra.mxu0 0.0
    %1188 = vmatprep.subr.mxu0 0.0
    %1189 = vmatpush1.xpose.msra.mxu0 0.0
    %1190 = vmatprep.subr.mxu0 0.0
    %1191 = vmatpush1.xpose.msra.mxu0 0.0
    %1192 = vmatprep.subr.mxu0 0.0
    %1193 = vmatpush1.xpose.msra.mxu0 0.0
    %1194 = vmatprep.subr.mxu0 0.0
    %1195 = vmatpush1.xpose.msra.mxu0 0.0
    %1196 = vmatprep.subr.mxu0 0.0
    %1197 = vmatpush1.xpose.msra.mxu0 0.0
    %1198 = vmatprep.subr.mxu0 0.0
    %1199 = vmatpush1.xpose.msra.mxu0 0.0
    %1200 = vmatprep.subr.mxu0 0.0
    %1201 = vmatpush1.xpose.msra.mxu0 0.0
    %1202 = vmatprep.subr.mxu0 0.0
    %1203 = vmatpush1.xpose.msra.mxu0 0.0
    %1204 = vmatprep.subr.mxu0 0.0
    %1205 = vmatpush1.xpose.msra.mxu0 0.0
    %1206 = vmatprep.subr.mxu0 0.0
    %1207 = vmatpush1.xpose.msra.mxu0 0.0
    %1208 = vmatprep.subr.mxu0 0.0
    %1209 = vmatpush1.xpose.msra.mxu0 0.0
    %1210 = vmatprep.subr.mxu0 0.0
    %1211 = vmatpush1.xpose.msra.mxu0 0.0
    %1212 = vmatprep.subr.mxu0 0.0
    %1213 = vmatpush1.xpose.msra.mxu0 0.0
    %1214 = vmatprep.subr.mxu0 0.0
    %1215 = vmatpush1.xpose.msra.mxu0 0.0
    %1216 = vmatprep.mubr.f32.mxu0 0.0
    %1217 = vmatmul.mubr.f32.gmra.mrb[0].mxu0 %v1148
    %v1218 = vpop.f32.mrb[0].mxu0
    %v1219 = vadd.f32 0.0, %v1218
    %v1220 = vpop.f32.mrb[0].mxu0
    %1221 = vdwg.mxu0
    %1222 = vrot.lane.b32.xlu0 %v440, 64
    %v1223 = vpop.permute.xlu0 %1222
    %1224 = vrot.lane.b32.xlu0 %v442, 64
    %v1225 = vpop.permute.xlu0 %1224
    %v1226 = vsel %vm485, %v1223, 0
    %v1228 = vsel %vm485, %v1225, 0
    %1230 = vmatprep.subr.mxu0 0.0
    %1231 = vmatpush1.xpose.msra.mxu0 %v1228
    %1232 = vmatprep.subr.mxu0 0.0
    %1233 = vmatpush1.xpose.msra.mxu0 0.0
    %1234 = vmatprep.subr.mxu0 0.0
    %1235 = vmatpush1.xpose.msra.mxu0 0.0
    %1236 = vmatprep.subr.mxu0 0.0
    %1237 = vmatpush1.xpose.msra.mxu0 0.0
    %1238 = vmatprep.subr.mxu0 0.0
    %1239 = vmatpush1.xpose.msra.mxu0 0.0
    %1240 = vmatprep.subr.mxu0 0.0
    %1241 = vmatpush1.xpose.msra.mxu0 0.0
    %1242 = vmatprep.subr.mxu0 0.0
    %1243 = vmatpush1.xpose.msra.mxu0 0.0
    %1244 = vmatprep.subr.mxu0 0.0
    %1245 = vmatpush1.xpose.msra.mxu0 0.0
    %1246 = vmatprep.subr.mxu0 0.0
    %1247 = vmatpush1.xpose.msra.mxu0 0.0
    %1248 = vmatprep.subr.mxu0 0.0
    %1249 = vmatpush1.xpose.msra.mxu0 0.0
    %1250 = vmatprep.subr.mxu0 0.0
    %1251 = vmatpush1.xpose.msra.mxu0 0.0
    %1252 = vmatprep.subr.mxu0 0.0
    %1253 = vmatpush1.xpose.msra.mxu0 0.0
    %1254 = vmatprep.subr.mxu0 0.0
    %1255 = vmatpush1.xpose.msra.mxu0 0.0
    %1256 = vmatprep.subr.mxu0 0.0
    %1257 = vmatpush1.xpose.msra.mxu0 0.0
    %1258 = vmatprep.subr.mxu0 0.0
    %1259 = vmatpush1.xpose.msra.mxu0 0.0
    %1260 = vmatprep.subr.mxu0 0.0
    %1261 = vmatpush1.xpose.msra.mxu0 0.0
    %1262 = vmatprep.subr.mxu0 0.0
    %1263 = vmatpush1.xpose.msra.mxu0 0.0
    %1264 = vmatprep.subr.mxu0 0.0
    %1265 = vmatpush1.xpose.msra.mxu0 0.0
    %1266 = vmatprep.subr.mxu0 0.0
    %1267 = vmatpush1.xpose.msra.mxu0 0.0
    %1268 = vmatprep.subr.mxu0 0.0
    %1269 = vmatpush1.xpose.msra.mxu0 0.0
    %1270 = vmatprep.subr.mxu0 0.0
    %1271 = vmatpush1.xpose.msra.mxu0 0.0
    %1272 = vmatprep.subr.mxu0 0.0
    %1273 = vmatpush1.xpose.msra.mxu0 0.0
    %1274 = vmatprep.subr.mxu0 0.0
    %1275 = vmatpush1.xpose.msra.mxu0 0.0
    %1276 = vmatprep.subr.mxu0 0.0
    %1277 = vmatpush1.xpose.msra.mxu0 0.0
    %1278 = vmatprep.subr.mxu0 0.0
    %1279 = vmatpush1.xpose.msra.mxu0 0.0
    %1280 = vmatprep.subr.mxu0 0.0
    %1281 = vmatpush1.xpose.msra.mxu0 0.0
    %1282 = vmatprep.subr.mxu0 0.0
    %1283 = vmatpush1.xpose.msra.mxu0 0.0
    %1284 = vmatprep.subr.mxu0 0.0
    %1285 = vmatpush1.xpose.msra.mxu0 0.0
    %1286 = vmatprep.subr.mxu0 0.0
    %1287 = vmatpush1.xpose.msra.mxu0 0.0
    %1288 = vmatprep.subr.mxu0 0.0
    %1289 = vmatpush1.xpose.msra.mxu0 0.0
    %1290 = vmatprep.subr.mxu0 0.0
    %1291 = vmatpush1.xpose.msra.mxu0 0.0
    %1292 = vmatprep.subr.mxu0 0.0
    %1293 = vmatpush1.xpose.msra.mxu0 0.0
    %1294 = vmatprep.mubr.f32.mxu0 0.0
    %1295 = vmatmul.mubr.f32.gmra.mrb[0].mxu0 %v1226
    %v1296 = vpop.f32.mrb[0].mxu0
    %v1297 = vadd.f32 0.0, %v1296
    %v1298 = vpop.f32.mrb[0].mxu0
    %1299 = vdwg.mxu0
    %v1300 = vmul.f32 %v1219, 0.17677669
    %v1301 = vmul.f32 %v1297, 0.17677669
    %v1302 = vsel %vm640, %v1300, -inf
    %1303 = vmax.xlane.f32.xlu0 %v1302
    %v1304 = vpop.xlane.xlu0 %1303
    %v1305 = vsel %vm640, %v1301, -inf
    %1306 = vmax.xlane.f32.xlu0 %v1305
    %v1307 = vpop.xlane.xlu0 %1306
    %v1308 = vsub.f32 %v1300, %v1304
    %v1309 = vsub.f32 %v1301, %v1307
    %v1310 = vmul.f32 %v1308, 1.442695
    %v1311 = vpow.pop %v1310
    %v1312 = vmul.f32 %v1309, 1.442695
    %v1313 = vpow.pop %v1312
    %v1314 = vsel %vm640, %v1311, 0.0
    %1315 = vadd.xlane.f32.xlu0 %v1314
    %v1316 = vpop.xlane.xlu0 %1315
    %v1317 = vsel %vm640, %v1313, 0.0
    %1318 = vadd.xlane.f32.xlu0 %v1317
    %v1319 = vpop.xlane.xlu0 %1318
    %v1320 = vrcp.pop %v1316
    %v1321 = vrcp.pop %v1319
    %v1322 = vmul.f32 %v1311, %v1320
    %v1323 = vmul.f32 %v1313, %v1321
    %1324 = vrot.lane.b32.xlu0 %v479, 64
    %v1325 = vpop.permute.xlu0 %1324
    %v1328 = vsel %vm663, %v1322, 0
    %1330 = vmatprep.subr.mxu0 0.0
    %1331 = vmatpush1.msra.mxu0 %v1325
    %1332 = vmatprep.subr.mxu0 0.0
    %1333 = vmatpush1.msra.mxu0 0.0
    %1334 = vmatprep.subr.mxu0 0.0
    %1335 = vmatpush1.msra.mxu0 0.0
    %1336 = vmatprep.subr.mxu0 0.0
    %1337 = vmatpush1.msra.mxu0 0.0
    %1338 = vmatprep.subr.mxu0 0.0
    %1339 = vmatpush1.msra.mxu0 0.0
    %1340 = vmatprep.subr.mxu0 0.0
    %1341 = vmatpush1.msra.mxu0 0.0
    %1342 = vmatprep.subr.mxu0 0.0
    %1343 = vmatpush1.msra.mxu0 0.0
    %1344 = vmatprep.subr.mxu0 0.0
    %1345 = vmatpush1.msra.mxu0 0.0
    %1346 = vmatprep.subr.mxu0 0.0
    %1347 = vmatpush1.msra.mxu0 0.0
    %1348 = vmatprep.subr.mxu0 0.0
    %1349 = vmatpush1.msra.mxu0 0.0
    %1350 = vmatprep.subr.mxu0 0.0
    %1351 = vmatpush1.msra.mxu0 0.0
    %1352 = vmatprep.subr.mxu0 0.0
    %1353 = vmatpush1.msra.mxu0 0.0
    %1354 = vmatprep.subr.mxu0 0.0
    %1355 = vmatpush1.msra.mxu0 0.0
    %1356 = vmatprep.subr.mxu0 0.0
    %1357 = vmatpush1.msra.mxu0 0.0
    %1358 = vmatprep.subr.mxu0 0.0
    %1359 = vmatpush1.msra.mxu0 0.0
    %1360 = vmatprep.subr.mxu0 0.0
    %1361 = vmatpush1.msra.mxu0 0.0
    %1362 = vmatprep.subr.mxu0 0.0
    %1363 = vmatpush1.msra.mxu0 0.0
    %1364 = vmatprep.subr.mxu0 0.0
    %1365 = vmatpush1.msra.mxu0 0.0
    %1366 = vmatprep.subr.mxu0 0.0
    %1367 = vmatpush1.msra.mxu0 0.0
    %1368 = vmatprep.subr.mxu0 0.0
    %1369 = vmatpush1.msra.mxu0 0.0
    %1370 = vmatprep.subr.mxu0 0.0
    %1371 = vmatpush1.msra.mxu0 0.0
    %1372 = vmatprep.subr.mxu0 0.0
    %1373 = vmatpush1.msra.mxu0 0.0
    %1374 = vmatprep.subr.mxu0 0.0
    %1375 = vmatpush1.msra.mxu0 0.0
    %1376 = vmatprep.subr.mxu0 0.0
    %1377 = vmatpush1.msra.mxu0 0.0
    %1378 = vmatprep.subr.mxu0 0.0
    %1379 = vmatpush1.msra.mxu0 0.0
    %1380 = vmatprep.subr.mxu0 0.0
    %1381 = vmatpush1.msra.mxu0 0.0
    %1382 = vmatprep.subr.mxu0 0.0
    %1383 = vmatpush1.msra.mxu0 0.0
    %1384 = vmatprep.subr.mxu0 0.0
    %1385 = vmatpush1.msra.mxu0 0.0
    %1386 = vmatprep.subr.mxu0 0.0
    %1387 = vmatpush1.msra.mxu0 0.0
    %1388 = vmatprep.subr.mxu0 0.0
    %1389 = vmatpush1.msra.mxu0 0.0
    %1390 = vmatprep.subr.mxu0 0.0
    %1391 = vmatpush1.msra.mxu0 0.0
    %1392 = vmatprep.subr.mxu0 0.0
    %1393 = vmatpush1.msra.mxu0 0.0
    %1394 = vmatprep.mubr.f32.mxu0 0.0
    %1395 = vmatmul.mubr.f32.gmra.mrb[0].mxu0 %v1328
    %v1396 = vpop.f32.mrb[0].mxu0
    %v1397 = vadd.f32 0.0, %v1396
    %v1398 = vpop.f32.mrb[0].mxu0
    %1399 = vdwg.mxu0
    %1400 = vrot.lane.b32.xlu0 %v482, 64
    %v1401 = vpop.permute.xlu0 %1400
    %v1404 = vsel %vm663, %v1323, 0
    %1406 = vmatprep.subr.mxu0 0.0
    %1407 = vmatpush1.msra.mxu0 %v1401
    %1408 = vmatprep.subr.mxu0 0.0
    %1409 = vmatpush1.msra.mxu0 0.0
    %1410 = vmatprep.subr.mxu0 0.0
    %1411 = vmatpush1.msra.mxu0 0.0
    %1412 = vmatprep.subr.mxu0 0.0
    %1413 = vmatpush1.msra.mxu0 0.0
    %1414 = vmatprep.subr.mxu0 0.0
    %1415 = vmatpush1.msra.mxu0 0.0
    %1416 = vmatprep.subr.mxu0 0.0
    %1417 = vmatpush1.msra.mxu0 0.0
    %1418 = vmatprep.subr.mxu0 0.0
    %1419 = vmatpush1.msra.mxu0 0.0
    %1420 = vmatprep.subr.mxu0 0.0
    %1421 = vmatpush1.msra.mxu0 0.0
    %1422 = vmatprep.subr.mxu0 0.0
    %1423 = vmatpush1.msra.mxu0 0.0
    %1424 = vmatprep.subr.mxu0 0.0
    %1425 = vmatpush1.msra.mxu0 0.0
    %1426 = vmatprep.subr.mxu0 0.0
    %1427 = vmatpush1.msra.mxu0 0.0
    %1428 = vmatprep.subr.mxu0 0.0
    %1429 = vmatpush1.msra.mxu0 0.0
    %1430 = vmatprep.subr.mxu0 0.0
    %1431 = vmatpush1.msra.mxu0 0.0
    %1432 = vmatprep.subr.mxu0 0.0
    %1433 = vmatpush1.msra.mxu0 0.0
    %1434 = vmatprep.subr.mxu0 0.0
    %1435 = vmatpush1.msra.mxu0 0.0
    %1436 = vmatprep.subr.mxu0 0.0
    %1437 = vmatpush1.msra.mxu0 0.0
    %1438 = vmatprep.subr.mxu0 0.0
    %1439 = vmatpush1.msra.mxu0 0.0
    %1440 = vmatprep.subr.mxu0 0.0
    %1441 = vmatpush1.msra.mxu0 0.0
    %1442 = vmatprep.subr.mxu0 0.0
    %1443 = vmatpush1.msra.mxu0 0.0
    %1444 = vmatprep.subr.mxu0 0.0
    %1445 = vmatpush1.msra.mxu0 0.0
    %1446 = vmatprep.subr.mxu0 0.0
    %1447 = vmatpush1.msra.mxu0 0.0
    %1448 = vmatprep.subr.mxu0 0.0
    %1449 = vmatpush1.msra.mxu0 0.0
    %1450 = vmatprep.subr.mxu0 0.0
    %1451 = vmatpush1.msra.mxu0 0.0
    %1452 = vmatprep.subr.mxu0 0.0
    %1453 = vmatpush1.msra.mxu0 0.0
    %1454 = vmatprep.subr.mxu0 0.0
    %1455 = vmatpush1.msra.mxu0 0.0
    %1456 = vmatprep.subr.mxu0 0.0
    %1457 = vmatpush1.msra.mxu0 0.0
    %1458 = vmatprep.subr.mxu0 0.0
    %1459 = vmatpush1.msra.mxu0 0.0
    %1460 = vmatprep.subr.mxu0 0.0
    %1461 = vmatpush1.msra.mxu0 0.0
    %1462 = vmatprep.subr.mxu0 0.0
    %1463 = vmatpush1.msra.mxu0 0.0
    %1464 = vmatprep.subr.mxu0 0.0
    %1465 = vmatpush1.msra.mxu0 0.0
    %1466 = vmatprep.subr.mxu0 0.0
    %1467 = vmatpush1.msra.mxu0 0.0
    %1468 = vmatprep.subr.mxu0 0.0
    %1469 = vmatpush1.msra.mxu0 0.0
    %1470 = vmatprep.mubr.f32.mxu0 0.0
    %1471 = vmatmul.mubr.f32.gmra.mrb[0].mxu0 %v1404
    %v1472 = vpop.f32.mrb[0].mxu0
    %v1473 = vadd.f32 0.0, %v1472
    %v1474 = vpop.f32.mrb[0].mxu0
    %1475 = vdwg.mxu0
    %1476 = vrot.lane.b32.xlu0 %v436, 32
    %v1477 = vpop.permute.xlu0 %1476
    %1478 = vrot.lane.b32.xlu0 %v438, 32
    %v1479 = vpop.permute.xlu0 %1478
    %v1480 = vsel %vm485, %v1477, 0
    %v1482 = vsel %vm485, %v1479, 0
    %1484 = vmatprep.subr.mxu0 0.0
    %1485 = vmatpush1.xpose.msra.mxu0 %v1482
    %1486 = vmatprep.subr.mxu0 0.0
    %1487 = vmatpush1.xpose.msra.mxu0 0.0
    %1488 = vmatprep.subr.mxu0 0.0
    %1489 = vmatpush1.xpose.msra.mxu0 0.0
    %1490 = vmatprep.subr.mxu0 0.0
    %1491 = vmatpush1.xpose.msra.mxu0 0.0
    %1492 = vmatprep.subr.mxu0 0.0
    %1493 = vmatpush1.xpose.msra.mxu0 0.0
    %1494 = vmatprep.subr.mxu0 0.0
    %1495 = vmatpush1.xpose.msra.mxu0 0.0
    %1496 = vmatprep.subr.mxu0 0.0
    %1497 = vmatpush1.xpose.msra.mxu0 0.0
    %1498 = vmatprep.subr.mxu0 0.0
    %1499 = vmatpush1.xpose.msra.mxu0 0.0
    %1500 = vmatprep.subr.mxu0 0.0
    %1501 = vmatpush1.xpose.msra.mxu0 0.0
    %1502 = vmatprep.subr.mxu0 0.0
    %1503 = vmatpush1.xpose.msra.mxu0 0.0
    %1504 = vmatprep.subr.mxu0 0.0
    %1505 = vmatpush1.xpose.msra.mxu0 0.0
    %1506 = vmatprep.subr.mxu0 0.0
    %1507 = vmatpush1.xpose.msra.mxu0 0.0
    %1508 = vmatprep.subr.mxu0 0.0
    %1509 = vmatpush1.xpose.msra.mxu0 0.0
    %1510 = vmatprep.subr.mxu0 0.0
    %1511 = vmatpush1.xpose.msra.mxu0 0.0
    %1512 = vmatprep.subr.mxu0 0.0
    %1513 = vmatpush1.xpose.msra.mxu0 0.0
    %1514 = vmatprep.subr.mxu0 0.0
    %1515 = vmatpush1.xpose.msra.mxu0 0.0
    %1516 = vmatprep.subr.mxu0 0.0
    %1517 = vmatpush1.xpose.msra.mxu0 0.0
    %1518 = vmatprep.subr.mxu0 0.0
    %1519 = vmatpush1.xpose.msra.mxu0 0.0
    %1520 = vmatprep.subr.mxu0 0.0
    %1521 = vmatpush1.xpose.msra.mxu0 0.0
    %1522 = vmatprep.subr.mxu0 0.0
    %1523 = vmatpush1.xpose.msra.mxu0 0.0
    %1524 = vmatprep.subr.mxu0 0.0
    %1525 = vmatpush1.xpose.msra.mxu0 0.0
    %1526 = vmatprep.subr.mxu0 0.0
    %1527 = vmatpush1.xpose.msra.mxu0 0.0
    %1528 = vmatprep.subr.mxu0 0.0
    %1529 = vmatpush1.xpose.msra.mxu0 0.0
    %1530 = vmatprep.subr.mxu0 0.0
    %1531 = vmatpush1.xpose.msra.mxu0 0.0
    %1532 = vmatprep.subr.mxu0 0.0
    %1533 = vmatpush1.xpose.msra.mxu0 0.0
    %1534 = vmatprep.subr.mxu0 0.0
    %1535 = vmatpush1.xpose.msra.mxu0 0.0
    %1536 = vmatprep.subr.mxu0 0.0
    %1537 = vmatpush1.xpose.msra.mxu0 0.0
    %1538 = vmatprep.subr.mxu0 0.0
    %1539 = vmatpush1.xpose.msra.mxu0 0.0
    %1540 = vmatprep.subr.mxu0 0.0
    %1541 = vmatpush1.xpose.msra.mxu0 0.0
    %1542 = vmatprep.subr.mxu0 0.0
    %1543 = vmatpush1.xpose.msra.mxu0 0.0
    %1544 = vmatprep.subr.mxu0 0.0
    %1545 = vmatpush1.xpose.msra.mxu0 0.0
    %1546 = vmatprep.subr.mxu0 0.0
    %1547 = vmatpush1.xpose.msra.mxu0 0.0
    %1548 = vmatprep.mubr.f32.mxu0 0.0
    %1549 = vmatmul.mubr.f32.gmra.mrb[0].mxu0 %v1480
    %v1550 = vpop.f32.mrb[0].mxu0
    %v1551 = vadd.f32 0.0, %v1550
    %v1552 = vpop.f32.mrb[0].mxu0
    %1553 = vdwg.mxu0
    %1554 = vrot.lane.b32.xlu0 %v440, 32
    %v1555 = vpop.permute.xlu0 %1554
    %1556 = vrot.lane.b32.xlu0 %v442, 32
    %v1557 = vpop.permute.xlu0 %1556
    %v1558 = vsel %vm485, %v1555, 0
    %v1560 = vsel %vm485, %v1557, 0
    %1562 = vmatprep.subr.mxu0 0.0
    %1563 = vmatpush1.xpose.msra.mxu0 %v1560
    %1564 = vmatprep.subr.mxu0 0.0
    %1565 = vmatpush1.xpose.msra.mxu0 0.0
    %1566 = vmatprep.subr.mxu0 0.0
    %1567 = vmatpush1.xpose.msra.mxu0 0.0
    %1568 = vmatprep.subr.mxu0 0.0
    %1569 = vmatpush1.xpose.msra.mxu0 0.0
    %1570 = vmatprep.subr.mxu0 0.0
    %1571 = vmatpush1.xpose.msra.mxu0 0.0
    %1572 = vmatprep.subr.mxu0 0.0
    %1573 = vmatpush1.xpose.msra.mxu0 0.0
    %1574 = vmatprep.subr.mxu0 0.0
    %1575 = vmatpush1.xpose.msra.mxu0 0.0
    %1576 = vmatprep.subr.mxu0 0.0
    %1577 = vmatpush1.xpose.msra.mxu0 0.0
    %1578 = vmatprep.subr.mxu0 0.0
    %1579 = vmatpush1.xpose.msra.mxu0 0.0
    %1580 = vmatprep.subr.mxu0 0.0
    %1581 = vmatpush1.xpose.msra.mxu0 0.0
    %1582 = vmatprep.subr.mxu0 0.0
    %1583 = vmatpush1.xpose.msra.mxu0 0.0
    %1584 = vmatprep.subr.mxu0 0.0
    %1585 = vmatpush1.xpose.msra.mxu0 0.0
    %1586 = vmatprep.subr.mxu0 0.0
    %1587 = vmatpush1.xpose.msra.mxu0 0.0
    %1588 = vmatprep.subr.mxu0 0.0
    %1589 = vmatpush1.xpose.msra.mxu0 0.0
    %1590 = vmatprep.subr.mxu0 0.0
    %1591 = vmatpush1.xpose.msra.mxu0 0.0
    %1592 = vmatprep.subr.mxu0 0.0
    %1593 = vmatpush1.xpose.msra.mxu0 0.0
    %1594 = vmatprep.subr.mxu0 0.0
    %1595 = vmatpush1.xpose.msra.mxu0 0.0
    %1596 = vmatprep.subr.mxu0 0.0
    %1597 = vmatpush1.xpose.msra.mxu0 0.0
    %1598 = vmatprep.subr.mxu0 0.0
    %1599 = vmatpush1.xpose.msra.mxu0 0.0
    %1600 = vmatprep.subr.mxu0 0.0
    %1601 = vmatpush1.xpose.msra.mxu0 0.0
    %1602 = vmatprep.subr.mxu0 0.0
    %1603 = vmatpush1.xpose.msra.mxu0 0.0
    %1604 = vmatprep.subr.mxu0 0.0
    %1605 = vmatpush1.xpose.msra.mxu0 0.0
    %1606 = vmatprep.subr.mxu0 0.0
    %1607 = vmatpush1.xpose.msra.mxu0 0.0
    %1608 = vmatprep.subr.mxu0 0.0
    %1609 = vmatpush1.xpose.msra.mxu0 0.0
    %1610 = vmatprep.subr.mxu0 0.0
    %1611 = vmatpush1.xpose.msra.mxu0 0.0
    %1612 = vmatprep.subr.mxu0 0.0
    %1613 = vmatpush1.xpose.msra.mxu0 0.0
    %1614 = vmatprep.subr.mxu0 0.0
    %1615 = vmatpush1.xpose.msra.mxu0 0.0
    %1616 = vmatprep.subr.mxu0 0.0
    %1617 = vmatpush1.xpose.msra.mxu0 0.0
    %1618 = vmatprep.subr.mxu0 0.0
    %1619 = vmatpush1.xpose.msra.mxu0 0.0
    %1620 = vmatprep.subr.mxu0 0.0
    %1621 = vmatpush1.xpose.msra.mxu0 0.0
    %1622 = vmatprep.subr.mxu0 0.0
    %1623 = vmatpush1.xpose.msra.mxu0 0.0
    %1624 = vmatprep.subr.mxu0 0.0
    %1625 = vmatpush1.xpose.msra.mxu0 0.0
    %1626 = vmatprep.mubr.f32.mxu0 0.0
    %1627 = vmatmul.mubr.f32.gmra.mrb[0].mxu0 %v1558
    %v1628 = vpop.f32.mrb[0].mxu0
    %v1629 = vadd.f32 0.0, %v1628
    %v1630 = vpop.f32.mrb[0].mxu0
    %1631 = vdwg.mxu0
    %v1632 = vmul.f32 %v1551, 0.17677669
    %v1633 = vmul.f32 %v1629, 0.17677669
    %v1634 = vsel %vm640, %v1632, -inf
    %1635 = vmax.xlane.f32.xlu0 %v1634
    %v1636 = vpop.xlane.xlu0 %1635
    %v1637 = vsel %vm640, %v1633, -inf
    %1638 = vmax.xlane.f32.xlu0 %v1637
    %v1639 = vpop.xlane.xlu0 %1638
    %v1640 = vsub.f32 %v1632, %v1636
    %v1641 = vsub.f32 %v1633, %v1639
    %v1642 = vmul.f32 %v1640, 1.442695
    %v1643 = vpow.pop %v1642
    %v1644 = vmul.f32 %v1641, 1.442695
    %v1645 = vpow.pop %v1644
    %v1646 = vsel %vm640, %v1643, 0.0
    %1647 = vadd.xlane.f32.xlu0 %v1646
    %v1648 = vpop.xlane.xlu0 %1647
    %v1649 = vsel %vm640, %v1645, 0.0
    %1650 = vadd.xlane.f32.xlu0 %v1649
    %v1651 = vpop.xlane.xlu0 %1650
    %v1652 = vrcp.pop %v1648
    %v1653 = vrcp.pop %v1651
    %v1654 = vmul.f32 %v1643, %v1652
    %v1655 = vmul.f32 %v1645, %v1653
    %1656 = vrot.lane.b32.xlu0 %v479, 32
    %v1657 = vpop.permute.xlu0 %1656
    %v1660 = vsel %vm663, %v1654, 0
    %1662 = vmatprep.subr.mxu0 0.0
    %1663 = vmatpush1.msra.mxu0 %v1657
    %1664 = vmatprep.subr.mxu0 0.0
    %1665 = vmatpush1.msra.mxu0 0.0
    %1666 = vmatprep.subr.mxu0 0.0
    %1667 = vmatpush1.msra.mxu0 0.0
    %1668 = vmatprep.subr.mxu0 0.0
    %1669 = vmatpush1.msra.mxu0 0.0
    %1670 = vmatprep.subr.mxu0 0.0
    %1671 = vmatpush1.msra.mxu0 0.0
    %1672 = vmatprep.subr.mxu0 0.0
    %1673 = vmatpush1.msra.mxu0 0.0
    %1674 = vmatprep.subr.mxu0 0.0
    %1675 = vmatpush1.msra.mxu0 0.0
    %1676 = vmatprep.subr.mxu0 0.0
    %1677 = vmatpush1.msra.mxu0 0.0
    %1678 = vmatprep.subr.mxu0 0.0
    %1679 = vmatpush1.msra.mxu0 0.0
    %1680 = vmatprep.subr.mxu0 0.0
    %1681 = vmatpush1.msra.mxu0 0.0
    %1682 = vmatprep.subr.mxu0 0.0
    %1683 = vmatpush1.msra.mxu0 0.0
    %1684 = vmatprep.subr.mxu0 0.0
    %1685 = vmatpush1.msra.mxu0 0.0
    %1686 = vmatprep.subr.mxu0 0.0
    %1687 = vmatpush1.msra.mxu0 0.0
    %1688 = vmatprep.subr.mxu0 0.0
    %1689 = vmatpush1.msra.mxu0 0.0
    %1690 = vmatprep.subr.mxu0 0.0
    %1691 = vmatpush1.msra.mxu0 0.0
    %1692 = vmatprep.subr.mxu0 0.0
    %1693 = vmatpush1.msra.mxu0 0.0
    %1694 = vmatprep.subr.mxu0 0.0
    %1695 = vmatpush1.msra.mxu0 0.0
    %1696 = vmatprep.subr.mxu0 0.0
    %1697 = vmatpush1.msra.mxu0 0.0
    %1698 = vmatprep.subr.mxu0 0.0
    %1699 = vmatpush1.msra.mxu0 0.0
    %1700 = vmatprep.subr.mxu0 0.0
    %1701 = vmatpush1.msra.mxu0 0.0
    %1702 = vmatprep.subr.mxu0 0.0
    %1703 = vmatpush1.msra.mxu0 0.0
    %1704 = vmatprep.subr.mxu0 0.0
    %1705 = vmatpush1.msra.mxu0 0.0
    %1706 = vmatprep.subr.mxu0 0.0
    %1707 = vmatpush1.msra.mxu0 0.0
    %1708 = vmatprep.subr.mxu0 0.0
    %1709 = vmatpush1.msra.mxu0 0.0
    %1710 = vmatprep.subr.mxu0 0.0
    %1711 = vmatpush1.msra.mxu0 0.0
    %1712 = vmatprep.subr.mxu0 0.0
    %1713 = vmatpush1.msra.mxu0 0.0
    %1714 = vmatprep.subr.mxu0 0.0
    %1715 = vmatpush1.msra.mxu0 0.0
    %1716 = vmatprep.subr.mxu0 0.0
    %1717 = vmatpush1.msra.mxu0 0.0
    %1718 = vmatprep.subr.mxu0 0.0
    %1719 = vmatpush1.msra.mxu0 0.0
    %1720 = vmatprep.subr.mxu0 0.0
    %1721 = vmatpush1.msra.mxu0 0.0
    %1722 = vmatprep.subr.mxu0 0.0
    %1723 = vmatpush1.msra.mxu0 0.0
    %1724 = vmatprep.subr.mxu0 0.0
    %1725 = vmatpush1.msra.mxu0 0.0
    %1726 = vmatprep.mubr.f32.mxu0 0.0
    %1727 = vmatmul.mubr.f32.gmra.mrb[0].mxu0 %v1660
    %v1728 = vpop.f32.mrb[0].mxu0
    %v1729 = vadd.f32 0.0, %v1728
    %v1730 = vpop.f32.mrb[0].mxu0
    %1731 = vdwg.mxu0
    %1732 = vrot.lane.b32.xlu0 %v482, 32
    %v1733 = vpop.permute.xlu0 %1732
    %v1736 = vsel %vm663, %v1655, 0
    %1738 = vmatprep.subr.mxu0 0.0
    %1739 = vmatpush1.msra.mxu0 %v1733
    %1740 = vmatprep.subr.mxu0 0.0
    %1741 = vmatpush1.msra.mxu0 0.0
    %1742 = vmatprep.subr.mxu0 0.0
    %1743 = vmatpush1.msra.mxu0 0.0
    %1744 = vmatprep.subr.mxu0 0.0
    %1745 = vmatpush1.msra.mxu0 0.0
    %1746 = vmatprep.subr.mxu0 0.0
    %1747 = vmatpush1.msra.mxu0 0.0
    %1748 = vmatprep.subr.mxu0 0.0
    %1749 = vmatpush1.msra.mxu0 0.0
    %1750 = vmatprep.subr.mxu0 0.0
    %1751 = vmatpush1.msra.mxu0 0.0
    %1752 = vmatprep.subr.mxu0 0.0
    %1753 = vmatpush1.msra.mxu0 0.0
    %1754 = vmatprep.subr.mxu0 0.0
    %1755 = vmatpush1.msra.mxu0 0.0
    %1756 = vmatprep.subr.mxu0 0.0
    %1757 = vmatpush1.msra.mxu0 0.0
    %1758 = vmatprep.subr.mxu0 0.0
    %1759 = vmatpush1.msra.mxu0 0.0
    %1760 = vmatprep.subr.mxu0 0.0
    %1761 = vmatpush1.msra.mxu0 0.0
    %1762 = vmatprep.subr.mxu0 0.0
    %1763 = vmatpush1.msra.mxu0 0.0
    %1764 = vmatprep.subr.mxu0 0.0
    %1765 = vmatpush1.msra.mxu0 0.0
    %1766 = vmatprep.subr.mxu0 0.0
    %1767 = vmatpush1.msra.mxu0 0.0
    %1768 = vmatprep.subr.mxu0 0.0
    %1769 = vmatpush1.msra.mxu0 0.0
    %1770 = vmatprep.subr.mxu0 0.0
    %1771 = vmatpush1.msra.mxu0 0.0
    %1772 = vmatprep.subr.mxu0 0.0
    %1773 = vmatpush1.msra.mxu0 0.0
    %1774 = vmatprep.subr.mxu0 0.0
    %1775 = vmatpush1.msra.mxu0 0.0
    %1776 = vmatprep.subr.mxu0 0.0
    %1777 = vmatpush1.msra.mxu0 0.0
    %1778 = vmatprep.subr.mxu0 0.0
    %1779 = vmatpush1.msra.mxu0 0.0
    %1780 = vmatprep.subr.mxu0 0.0
    %1781 = vmatpush1.msra.mxu0 0.0
    %1782 = vmatprep.subr.mxu0 0.0
    %1783 = vmatpush1.msra.mxu0 0.0
    %1784 = vmatprep.subr.mxu0 0.0
    %1785 = vmatpush1.msra.mxu0 0.0
    %1786 = vmatprep.subr.mxu0 0.0
    %1787 = vmatpush1.msra.mxu0 0.0
    %1788 = vmatprep.subr.mxu0 0.0
    %1789 = vmatpush1.msra.mxu0 0.0
    %1790 = vmatprep.subr.mxu0 0.0
    %1791 = vmatpush1.msra.mxu0 0.0
    %1792 = vmatprep.subr.mxu0 0.0
    %1793 = vmatpush1.msra.mxu0 0.0
    %1794 = vmatprep.subr.mxu0 0.0
    %1795 = vmatpush1.msra.mxu0 0.0
    %1796 = vmatprep.subr.mxu0 0.0
    %1797 = vmatpush1.msra.mxu0 0.0
    %1798 = vmatprep.subr.mxu0 0.0
    %1799 = vmatpush1.msra.mxu0 0.0
    %1800 = vmatprep.subr.mxu0 0.0
    %1801 = vmatpush1.msra.mxu0 0.0
    %1802 = vmatprep.mubr.f32.mxu0 0.0
    %1803 = vmatmul.mubr.f32.gmra.mrb[0].mxu0 %v1736
    %v1804 = vpop.f32.mrb[0].mxu0
    %v1805 = vadd.f32 0.0, %v1804
    %v1806 = vpop.f32.mrb[0].mxu0
    %1807 = vdwg.mxu0
    %v1810 = vrot.slane %v807, 7
    %vm1811 = vcmask 1041409
    %v1812 = vsel %vm1811, %v1810, %v734
    %v1816 = vrot.slane %v1141, 7
    %v1817 = vsel %vm1811, %v1816, %v1064
    %1818 = vrot.lane.b32.xlu0 %v1817, 32
    %v1819 = vpop.permute.xlu0 %1818
    %v1823 = vrot.slane %v1473, 7
    %v1824 = vsel %vm1811, %v1823, %v1397
    %1825 = vrot.lane.b32.xlu0 %v1824, 64
    %v1826 = vpop.permute.xlu0 %1825
    %v1830 = vrot.slane %v1805, 7
    %v1831 = vsel %vm1811, %v1830, %v1729
    %1832 = vrot.lane.b32.xlu0 %v1831, 96
    %v1833 = vpop.permute.xlu0 %1832
    %v1835 = vsel %vm485, %v1812, %v1819
    %v1836 = vsel %vm105, %v1835, %v1826
    %vm1837 = vcmask 785408
    %v1838 = vsel %vm1837, %v1836, %v1833
    %v1839 = vld [vmem:[#allocation5 + $0xc] sm:$0xf]
    %v1840 = vld [vmem:[#allocation5 + $0x28] sm:$0xf]
    %v1841 = vld [vmem:[#allocation5 + $0x44] sm:$0xf]
    %v1842 = vld [vmem:[#allocation5 + $0x60] sm:$0xf]
    %v1843 = vld [vmem:[#allocation5 + $0x7c] sm:$0xf]
    %v1844 = vld [vmem:[#allocation5 + $0x98] sm:$0xf]
    %v1845 = vld [vmem:[#allocation5 + $0xb4] sm:$0xf]
    %v1846 = vld [vmem:[#allocation5 + $0xd0] sm:$0xf]
    %v1847 = vld [vmem:[#allocation5 + $0xec] sm:$0xf]
    %v1848 = vld [vmem:[#allocation5 + $0x108] sm:$0xf]
    %v1849 = vld [vmem:[#allocation5 + $0x124] sm:$0xf]
    %v1850 = vld [vmem:[#allocation5 + $0x140] sm:$0xf]
    %v1851 = vld [vmem:[#allocation5 + $0x15c] sm:$0xf]
    %v1852 = vld [vmem:[#allocation5 + $0x178] sm:$0xf]
    %v1853 = vld [vmem:[#allocation5 + $0x194] sm:$0xf]
    %v1854 = vld [vmem:[#allocation5 + $0x1b0] sm:$0xf]
    %v1855 = vpack.c.bf16 %v1838, %v1838
    %v1856 = vlaneseq
    %v1857 = vshrl.u32 %v1856, 7
    %v1858 = vsub.s32 0, %v1857
    %v1859 = vrot.slane %v80, %v1858
    %v1876 = vunpack.c.l.b16 %v1839
    %v1877 = vunpack.c.l.b16 %v1840
    %v1878 = vunpack.c.l.b16 %v1841
    %v1879 = vunpack.c.l.b16 %v1842
    %v1880 = vunpack.c.l.b16 %v1843
    %v1881 = vunpack.c.l.b16 %v1844
    %v1882 = vunpack.c.l.b16 %v1845
    %v1883 = vunpack.c.l.b16 %v1846
    %v1884 = vunpack.c.l.b16 %v1847
    %v1885 = vunpack.c.l.b16 %v1848
    %v1886 = vunpack.c.l.b16 %v1849
    %v1887 = vunpack.c.l.b16 %v1850
    %v1888 = vunpack.c.l.b16 %v1851
    %v1889 = vunpack.c.l.b16 %v1852
    %v1890 = vunpack.c.l.b16 %v1853
    %v1891 = vunpack.c.l.b16 %v1854
    %v1892 = vpack.c.b16 %v1877, %v1876
    %v1893 = vpack.c.b16 %v1879, %v1878
    %v1894 = vpack.c.b16 %v1881, %v1880
    %v1895 = vpack.c.b16 %v1883, %v1882
    %v1896 = vpack.c.b16 %v1885, %v1884
    %v1897 = vpack.c.b16 %v1887, %v1886
    %v1898 = vpack.c.b16 %v1889, %v1888
    %v1899 = vpack.c.b16 %v1891, %v1890
    %1908 = vmatprep.subr.bf16.mxu0 0
    %1909 = vmatpush1.bf16.msra.mxu0 %v1892
    %1910 = vmatprep.subr.bf16.mxu0 0
    %1911 = vmatpush1.bf16.msra.mxu0 %v1893
    %1912 = vmatprep.subr.bf16.mxu0 0
    %1913 = vmatpush1.bf16.msra.mxu0 %v1894
    %1914 = vmatprep.subr.bf16.mxu0 0
    %1915 = vmatpush1.bf16.msra.mxu0 %v1895
    %1916 = vmatprep.subr.bf16.mxu0 0
    %1917 = vmatpush1.bf16.msra.mxu0 %v1896
    %1918 = vmatprep.subr.bf16.mxu0 0
    %1919 = vmatpush1.bf16.msra.mxu0 %v1897
    %1920 = vmatprep.subr.bf16.mxu0 0
    %1921 = vmatpush1.bf16.msra.mxu0 %v1898
    %1922 = vmatprep.subr.bf16.mxu0 0
    %1923 = vmatpush1.bf16.msra.mxu0 %v1899
    %1924 = vmatprep.subr.bf16.mxu0 0
    %1925 = vmatpush1.bf16.msra.mxu0 0
    %1926 = vmatprep.subr.bf16.mxu0 0
    %1927 = vmatpush1.bf16.msra.mxu0 0
    %1928 = vmatprep.subr.bf16.mxu0 0
    %1929 = vmatpush1.bf16.msra.mxu0 0
    %1930 = vmatprep.subr.bf16.mxu0 0
    %1931 = vmatpush1.bf16.msra.mxu0 0
    %1932 = vmatprep.subr.bf16.mxu0 0
    %1933 = vmatpush1.bf16.msra.mxu0 0
    %1934 = vmatprep.subr.bf16.mxu0 0
    %1935 = vmatpush1.bf16.msra.mxu0 0
    %1936 = vmatprep.subr.bf16.mxu0 0
    %1937 = vmatpush1.bf16.msra.mxu0 0
    %1938 = vmatprep.subr.bf16.mxu0 0
    %1939 = vmatpush1.bf16.msra.mxu0 0
    %1940 = vmatprep.mubr.bf16.mxu0 0
    %1941 = vmatmul.mubr.bf16.gmra.mrb[0].mxu0 %v1855
    %v1942 = vpop.f32.mrb[0].mxu0
    %v1943 = vadd.f32 %v1859, %v1942
    %v1944 = vpop.f32.mrb[0].mxu0
    %v1945 = vpop.f32.mrb[0].mxu0
    %v1946 = vpop.f32.mrb[0].mxu0
    %1947 = vdwg.mxu0
    %v1949 = vrot.slane %v1943, 1
    %v1952 = vadd.f32 %v222, %v1943
    %v1953 = vadd.f32 %v223, %v1949
    %v1956 = vrot.slane %v1953, 7
    %v1957 = vsel %vm1811, %v1956, %v1952
    %vm1959 = vcmask 1041408
    %v1960 = vsel %vm1959, %v1957, 0.0
    %1961 = vadd.xlane.f32.xlu0 %v1960
    %v1962 = vpop.xlane.xlu0 %1961
    %v1963 = vmul.f32 %v1962, %v193
    %v1965 = vrot.slane %v1963, 1
    %v1968 = vsub.f32 %v1952, %v1963
    %v1969 = vsub.f32 %v1953, %v1965
    %v1970 = vmul.f32 %v1968, %v1968
    %v1971 = vmul.f32 %v1969, %v1969
    %v1974 = vrot.slane %v1971, 7
    %v1975 = vsel %vm1811, %v1974, %v1970
    %v1977 = vsel %vm1959, %v1975, 0.0
    %1978 = vadd.xlane.f32.xlu0 %v1977
    %v1979 = vpop.xlane.xlu0 %1978
    %v1980 = vmul.f32 %v1979, %v193
    %v1981 = vadd.f32 %v1980, 1e-12
    %v1982 = vrsqrt.pop %v1981
    %v1984 = vrot.slane %v1982, 1
    %v1987 = vmul.f32 %v1968, %v1982
    %v1988 = vmul.f32 %v1969, %v1984
    %v1989 = vlaneseq
    %v1990 = vshrl.u32 %v1989, 7
    %v1991 = vsub.s32 0, %v1990
    %v1992 = vrot.slane %v81, %v1991
    %v1993 = vmul.f32 %v1987, %v1992
    %v1994 = vmul.f32 %v1988, %v1992
    %v1995 = vlaneseq
    %v1996 = vshrl.u32 %v1995, 7
    %v1997 = vsub.s32 0, %v1996
    %v1998 = vrot.slane %v82, %v1997
    %v1999 = vadd.f32 %v1993, %v1998
    %v2000 = vadd.f32 %v1994, %v1998
    %v2001 = vld [vmem:[#allocation5 + $0x10] sm:$0xff]
    %v2002 = vld [vmem:[#allocation5 + $0x2c] sm:$0xff]
    %v2003 = vld [vmem:[#allocation5 + $0x48] sm:$0xff]
    %v2004 = vld [vmem:[#allocation5 + $0x64] sm:$0xff]
    %v2005 = vld [vmem:[#allocation5 + $0x80] sm:$0xff]
    %v2006 = vld [vmem:[#allocation5 + $0x9c] sm:$0xff]
    %v2007 = vld [vmem:[#allocation5 + $0xb8] sm:$0xff]
    %v2008 = vld [vmem:[#allocation5 + $0xd4] sm:$0xff]
    %v2009 = vld [vmem:[#allocation5 + $0xf0] sm:$0xff]
    %v2010 = vld [vmem:[#allocation5 + $0x10c] sm:$0xff]
    %v2011 = vld [vmem:[#allocation5 + $0x128] sm:$0xff]
    %v2012 = vld [vmem:[#allocation5 + $0x144] sm:$0xff]
    %v2013 = vld [vmem:[#allocation5 + $0x160] sm:$0xff]
    %v2014 = vld [vmem:[#allocation5 + $0x17c] sm:$0xff]
    %v2015 = vld [vmem:[#allocation5 + $0x198] sm:$0xff]
    %v2016 = vld [vmem:[#allocation5 + $0x1b4] sm:$0xff]
    %v2017 = vpack.c.bf16 %v1999, %v1999
    %v2018 = vpack.c.bf16 %v2000, %v2000
    %v2020 = vlaneseq
    %v2021 = vshrl.u32 %v2020, 7
    %v2022 = vsub.s32 0, %v2021
    %v2023 = vrot.slane %v90, %v2022
    %v2024 = vlaneseq
    %v2025 = vshrl.u32 %v2024, 7
    %v2026 = vsub.s32 1, %v2025
    %v2027 = vrot.slane %v90, %v2026
    %v2032 = vunpack.c.l.b16 %v2017
    %v2033 = vunpack.c.l.b16 %v2018
    %v2034 = vrot.slane %v2033, 7
    %v2035 = vsel %vm1811, %v2034, %v2032
    %v2036 = vpack.c.b16 %v2035, %v2035
    %v2054 = vunpack.c.l.b16 %v2001
    %v2055 = vunpack.c.h.b16 %v2001
    %v2056 = vunpack.c.l.b16 %v2002
    %v2057 = vunpack.c.h.b16 %v2002
    %v2058 = vunpack.c.l.b16 %v2003
    %v2059 = vunpack.c.h.b16 %v2003
    %v2060 = vunpack.c.l.b16 %v2004
    %v2061 = vunpack.c.h.b16 %v2004
    %v2062 = vunpack.c.l.b16 %v2005
    %v2063 = vunpack.c.h.b16 %v2005
    %v2064 = vunpack.c.l.b16 %v2006
    %v2065 = vunpack.c.h.b16 %v2006
    %v2066 = vunpack.c.l.b16 %v2007
    %v2067 = vunpack.c.h.b16 %v2007
    %v2068 = vunpack.c.l.b16 %v2008
    %v2069 = vunpack.c.h.b16 %v2008
    %v2070 = vunpack.c.l.b16 %v2009
    %v2071 = vunpack.c.h.b16 %v2009
    %v2072 = vunpack.c.l.b16 %v2010
    %v2073 = vunpack.c.h.b16 %v2010
    %v2074 = vunpack.c.l.b16 %v2011
    %v2075 = vunpack.c.h.b16 %v2011
    %v2076 = vunpack.c.l.b16 %v2012
    %v2077 = vunpack.c.h.b16 %v2012
    %v2078 = vunpack.c.l.b16 %v2013
    %v2079 = vunpack.c.h.b16 %v2013
    %v2080 = vunpack.c.l.b16 %v2014
    %v2081 = vunpack.c.h.b16 %v2014
    %v2082 = vunpack.c.l.b16 %v2015
    %v2083 = vunpack.c.h.b16 %v2015
    %v2084 = vunpack.c.l.b16 %v2016
    %v2085 = vunpack.c.h.b16 %v2016
    %v2086 = vpack.c.b16 %v2056, %v2054
    %v2087 = vpack.c.b16 %v2057, %v2055
    %v2088 = vpack.c.b16 %v2060, %v2058
    %v2089 = vpack.c.b16 %v2061, %v2059
    %v2090 = vpack.c.b16 %v2064, %v2062
    %v2091 = vpack.c.b16 %v2065, %v2063
    %v2092 = vpack.c.b16 %v2068, %v2066
    %v2093 = vpack.c.b16 %v2069, %v2067
    %v2094 = vpack.c.b16 %v2072, %v2070
    %v2095 = vpack.c.b16 %v2073, %v2071
    %v2096 = vpack.c.b16 %v2076, %v2074
    %v2097 = vpack.c.b16 %v2077, %v2075
    %v2098 = vpack.c.b16 %v2080, %v2078
    %v2099 = vpack.c.b16 %v2081, %v2079
    %v2100 = vpack.c.b16 %v2084, %v2082
    %v2101 = vpack.c.b16 %v2085, %v2083
    %2118 = vmatprep.subr.bf16.mxu0 %v2087
    %2119 = vmatpush1.bf16.msra.mxu0 %v2086
    %2120 = vmatprep.subr.bf16.mxu0 %v2089
    %2121 = vmatpush1.bf16.msra.mxu0 %v2088
    %2122 = vmatprep.subr.bf16.mxu0 %v2091
    %2123 = vmatpush1.bf16.msra.mxu0 %v2090
    %2124 = vmatprep.subr.bf16.mxu0 %v2093
    %2125 = vmatpush1.bf16.msra.mxu0 %v2092
    %2126 = vmatprep.subr.bf16.mxu0 %v2095
    %2127 = vmatpush1.bf16.msra.mxu0 %v2094
    %2128 = vmatprep.subr.bf16.mxu0 %v2097
    %2129 = vmatpush1.bf16.msra.mxu0 %v2096
    %2130 = vmatprep.subr.bf16.mxu0 %v2099
    %2131 = vmatpush1.bf16.msra.mxu0 %v2098
    %2132 = vmatprep.subr.bf16.mxu0 %v2101
    %2133 = vmatpush1.bf16.msra.mxu0 %v2100
    %2134 = vmatprep.subr.bf16.mxu0 0
    %2135 = vmatpush1.bf16.msra.mxu0 0
    %2136 = vmatprep.subr.bf16.mxu0 0
    %2137 = vmatpush1.bf16.msra.mxu0 0
    %2138 = vmatprep.subr.bf16.mxu0 0
    %2139 = vmatpush1.bf16.msra.mxu0 0
    %2140 = vmatprep.subr.bf16.mxu0 0
    %2141 = vmatpush1.bf16.msra.mxu0 0
    %2142 = vmatprep.subr.bf16.mxu0 0
    %2143 = vmatpush1.bf16.msra.mxu0 0
    %2144 = vmatprep.subr.bf16.mxu0 0
    %2145 = vmatpush1.bf16.msra.mxu0 0
    %2146 = vmatprep.subr.bf16.mxu0 0
    %2147 = vmatpush1.bf16.msra.mxu0 0
    %2148 = vmatprep.subr.bf16.mxu0 0
    %2149 = vmatpush1.bf16.msra.mxu0 0
    %2150 = vmatprep.mubr.bf16.mxu0 0
    %2151 = vmatmul.mubr.bf16.gmra.mrb[0].mxu0 %v2036
    %v2152 = vpop.f32.mrb[0].mxu0
    %v2153 = vadd.f32 %v2023, %v2152
    %v2154 = vpop.f32.mrb[0].mxu0
    %v2155 = vadd.f32 %v2027, %v2154
    %v2156 = vpop.f32.mrb[0].mxu0
    %v2157 = vpop.f32.mrb[0].mxu0
    %2158 = vdwg.mxu0
    %v2159 = vmul.f32 %v2153, %v2153
    %v2160 = vmul.f32 %v2155, %v2155
    %v2161 = vmul.f32 %v2153, %v2159
    %v2162 = vmul.f32 %v2155, %v2160
    %v2163 = vmul.f32 %v2161, 0.044715
    %v2164 = vmul.f32 %v2162, 0.044715
    %v2165 = vadd.f32 %v2153, %v2163
    %v2166 = vadd.f32 %v2155, %v2164
    %v2167 = vmul.f32 %v2165, 0.7978846
    %v2168 = vmul.f32 %v2166, 0.7978846
    %v2169 = vtanh.pop %v2167
    %v2170 = vtanh.pop %v2168
    %v2171 = vadd.f32 %v2169, 1.0
    %v2172 = vadd.f32 %v2170, 1.0
    %v2173 = vmul.f32 %v2171, 0.5
    %v2174 = vmul.f32 %v2172, 0.5
    %v2175 = vmul.f32 %v2153, %v2173
    %v2176 = vmul.f32 %v2155, %v2174
    %v2177 = vld [vmem:[#allocation7] sm:$0xf]
    %v2178 = vld [vmem:[#allocation7 + $0x4] sm:$0xf]
    %v2179 = vld [vmem:[#allocation7 + $0x8] sm:$0xf]
    %v2180 = vld [vmem:[#allocation7 + $0xc] sm:$0xf]
    %v2181 = vld [vmem:[#allocation7 + $0x10] sm:$0xf]
    %v2182 = vld [vmem:[#allocation7 + $0x14] sm:$0xf]
    %v2183 = vld [vmem:[#allocation7 + $0x18] sm:$0xf]
    %v2184 = vld [vmem:[#allocation7 + $0x1c] sm:$0xf]
    %v2185 = vld [vmem:[#allocation7 + $0x20] sm:$0xf]
    %v2186 = vld [vmem:[#allocation7 + $0x24] sm:$0xf]
    %v2187 = vld [vmem:[#allocation7 + $0x28] sm:$0xf]
    %v2188 = vld [vmem:[#allocation7 + $0x2c] sm:$0xf]
    %v2189 = vld [vmem:[#allocation7 + $0x30] sm:$0xf]
    %v2190 = vld [vmem:[#allocation7 + $0x34] sm:$0xf]
    %v2191 = vld [vmem:[#allocation7 + $0x38] sm:$0xf]
    %v2192 = vld [vmem:[#allocation7 + $0x3c] sm:$0xf]
    %v2193 = vld [vmem:[#allocation7 + $0x40] sm:$0xf]
    %v2194 = vld [vmem:[#allocation7 + $0x44] sm:$0xf]
    %v2195 = vld [vmem:[#allocation7 + $0x48] sm:$0xf]
    %v2196 = vld [vmem:[#allocation7 + $0x4c] sm:$0xf]
    %v2197 = vld [vmem:[#allocation7 + $0x50] sm:$0xf]
    %v2198 = vld [vmem:[#allocation7 + $0x54] sm:$0xf]
    %v2199 = vld [vmem:[#allocation7 + $0x58] sm:$0xf]
    %v2200 = vld [vmem:[#allocation7 + $0x5c] sm:$0xf]
    %v2201 = vld [vmem:[#allocation7 + $0x60] sm:$0xf]
    %v2202 = vld [vmem:[#allocation7 + $0x64] sm:$0xf]
    %v2203 = vld [vmem:[#allocation7 + $0x68] sm:$0xf]
    %v2204 = vld [vmem:[#allocation7 + $0x6c] sm:$0xf]
    %v2205 = vld [vmem:[#allocation7 + $0x70] sm:$0xf]
    %v2206 = vld [vmem:[#allocation7 + $0x74] sm:$0xf]
    %v2207 = vld [vmem:[#allocation7 + $0x78] sm:$0xf]
    %v2208 = vld [vmem:[#allocation7 + $0x7c] sm:$0xf]
    %v2209 = vpack.c.bf16 %v2175, %v2175
    %v2210 = vpack.c.bf16 %v2176, %v2176
    %v2211 = vlaneseq
    %v2212 = vshrl.u32 %v2211, 7
    %v2213 = vsub.s32 0, %v2212
    %v2214 = vrot.slane %v83, %v2213
    %v2247 = vunpack.c.l.b16 %v2177
    %v2248 = vunpack.c.l.b16 %v2178
    %v2249 = vunpack.c.l.b16 %v2179
    %v2250 = vunpack.c.l.b16 %v2180
    %v2251 = vunpack.c.l.b16 %v2181
    %v2252 = vunpack.c.l.b16 %v2182
    %v2253 = vunpack.c.l.b16 %v2183
    %v2254 = vunpack.c.l.b16 %v2184
    %v2255 = vunpack.c.l.b16 %v2185
    %v2256 = vunpack.c.l.b16 %v2186
    %v2257 = vunpack.c.l.b16 %v2187
    %v2258 = vunpack.c.l.b16 %v2188
    %v2259 = vunpack.c.l.b16 %v2189
    %v2260 = vunpack.c.l.b16 %v2190
    %v2261 = vunpack.c.l.b16 %v2191
    %v2262 = vunpack.c.l.b16 %v2192
    %v2263 = vunpack.c.l.b16 %v2193
    %v2264 = vunpack.c.l.b16 %v2194
    %v2265 = vunpack.c.l.b16 %v2195
    %v2266 = vunpack.c.l.b16 %v2196
    %v2267 = vunpack.c.l.b16 %v2197
    %v2268 = vunpack.c.l.b16 %v2198
    %v2269 = vunpack.c.l.b16 %v2199
    %v2270 = vunpack.c.l.b16 %v2200
    %v2271 = vunpack.c.l.b16 %v2201
    %v2272 = vunpack.c.l.b16 %v2202
    %v2273 = vunpack.c.l.b16 %v2203
    %v2274 = vunpack.c.l.b16 %v2204
    %v2275 = vunpack.c.l.b16 %v2205
    %v2276 = vunpack.c.l.b16 %v2206
    %v2277 = vunpack.c.l.b16 %v2207
    %v2278 = vunpack.c.l.b16 %v2208
    %v2279 = vpack.c.b16 %v2248, %v2247
    %v2280 = vpack.c.b16 %v2250, %v2249
    %v2281 = vpack.c.b16 %v2252, %v2251
    %v2282 = vpack.c.b16 %v2254, %v2253
    %v2283 = vpack.c.b16 %v2256, %v2255
    %v2284 = vpack.c.b16 %v2258, %v2257
    %v2285 = vpack.c.b16 %v2260, %v2259
    %v2286 = vpack.c.b16 %v2262, %v2261
    %v2287 = vpack.c.b16 %v2264, %v2263
    %v2288 = vpack.c.b16 %v2266, %v2265
    %v2289 = vpack.c.b16 %v2268, %v2267
    %v2290 = vpack.c.b16 %v2270, %v2269
    %v2291 = vpack.c.b16 %v2272, %v2271
    %v2292 = vpack.c.b16 %v2274, %v2273
    %v2293 = vpack.c.b16 %v2276, %v2275
    %v2294 = vpack.c.b16 %v2278, %v2277
    %2311 = vmatprep.subr.bf16.mxu0 0
    %2312 = vmatpush1.bf16.msra.mxu0 %v2279
    %2313 = vmatprep.subr.bf16.mxu0 0
    %2314 = vmatpush1.bf16.msra.mxu0 %v2280
    %2315 = vmatprep.subr.bf16.mxu0 0
    %2316 = vmatpush1.bf16.msra.mxu0 %v2281
    %2317 = vmatprep.subr.bf16.mxu0 0
    %2318 = vmatpush1.bf16.msra.mxu0 %v2282
    %2319 = vmatprep.subr.bf16.mxu0 0
    %2320 = vmatpush1.bf16.msra.mxu0 %v2283
    %2321 = vmatprep.subr.bf16.mxu0 0
    %2322 = vmatpush1.bf16.msra.mxu0 %v2284
    %2323 = vmatprep.subr.bf16.mxu0 0
    %2324 = vmatpush1.bf16.msra.mxu0 %v2285
    %2325 = vmatprep.subr.bf16.mxu0 0
    %2326 = vmatpush1.bf16.msra.mxu0 %v2286
    %2327 = vmatprep.subr.bf16.mxu0 0
    %2328 = vmatpush1.bf16.msra.mxu0 %v2287
    %2329 = vmatprep.subr.bf16.mxu0 0
    %2330 = vmatpush1.bf16.msra.mxu0 %v2288
    %2331 = vmatprep.subr.bf16.mxu0 0
    %2332 = vmatpush1.bf16.msra.mxu0 %v2289
    %2333 = vmatprep.subr.bf16.mxu0 0
    %2334 = vmatpush1.bf16.msra.mxu0 %v2290
    %2335 = vmatprep.subr.bf16.mxu0 0
    %2336 = vmatpush1.bf16.msra.mxu0 %v2291
    %2337 = vmatprep.subr.bf16.mxu0 0
    %2338 = vmatpush1.bf16.msra.mxu0 %v2292
    %2339 = vmatprep.subr.bf16.mxu0 0
    %2340 = vmatpush1.bf16.msra.mxu0 %v2293
    %2341 = vmatprep.subr.bf16.mxu0 0
    %2342 = vmatpush1.bf16.msra.mxu0 %v2294
    %2343 = vmatprep.mubr.bf16.mxu0 %v2210
    %2344 = vmatmul.mubr.bf16.gmra.mrb[0].mxu0 %v2209
    %v2345 = vpop.f32.mrb[0].mxu0
    %v2346 = vadd.f32 %v2214, %v2345
    %v2347 = vpop.f32.mrb[0].mxu0
    %v2348 = vpop.f32.mrb[0].mxu0
    %v2349 = vpop.f32.mrb[0].mxu0
    %2350 = vdwg.mxu0
    %v2352 = vrot.slane %v2346, 1
    %v2355 = vadd.f32 %v1999, %v2346
    %v2356 = vadd.f32 %v2000, %v2352
    %v2359 = vrot.slane %v2356, 7
    %v2360 = vsel %vm1811, %v2359, %v2355
    %v2362 = vsel %vm1959, %v2360, 0.0
    %2363 = vadd.xlane.f32.xlu0 %v2362
    %v2364 = vpop.xlane.xlu0 %2363
    %v2365 = vmul.f32 %v2364, %v193
    %v2367 = vrot.slane %v2365, 1
    %v2370 = vsub.f32 %v2355, %v2365
    %v2371 = vsub.f32 %v2356, %v2367
    %v2372 = vmul.f32 %v2370, %v2370
    %v2373 = vmul.f32 %v2371, %v2371
    %v2376 = vrot.slane %v2373, 7
    %v2377 = vsel %vm1811, %v2376, %v2372
    %v2379 = vsel %vm1959, %v2377, 0.0
    %2380 = vadd.xlane.f32.xlu0 %v2379
    %v2381 = vpop.xlane.xlu0 %2380
    %v2382 = vmul.f32 %v2381, %v193
    %v2383 = vadd.f32 %v2382, 1e-12
    %v2384 = vrsqrt.pop %v2383
    %v2386 = vrot.slane %v2384, 1
    %v2389 = vmul.f32 %v2370, %v2384
    %v2390 = vmul.f32 %v2371, %v2386
    %v2391 = vlaneseq
    %v2392 = vshrl.u32 %v2391, 7
    %v2393 = vsub.s32 0, %v2392
    %v2394 = vrot.slane %v84, %v2393
    %v2395 = vmul.f32 %v2389, %v2394
    %v2396 = vmul.f32 %v2390, %v2394
    %v2397 = vlaneseq
    %v2398 = vshrl.u32 %v2397, 7
    %v2399 = vsub.s32 0, %v2398
    %v2400 = vrot.slane %v85, %v2399
    %v2401 = vadd.f32 %v2395, %v2400
    %v2402 = vadd.f32 %v2396, %v2400
    %2404 = vset.pattern.permute.xlu0 0
    %2405 = vperm.xlu0 %2404, %v68
    %v2406 = vpop.permute.xlu0 %2405
    %v2408 = vlaneseq
    %v2409 = vshrl.u32 %v2408, 7
    %v2410 = vsub.s32 0, %v2409
    %v2411 = vrot.slane %v86, %v2410
    %v2412 = vmul.f32 %v2406, %v2411
    %v2413 = vlaneseq
    %v2414 = vshrl.u32 %v2413, 7
    %v2415 = vsub.s32 0, %v2414
    %v2416 = vrot.slane %v87, %v2415
    %v2417 = vadd.f32 %v2416, %v2412
    %2418 = vset.pattern.permute.xlu0 1
    %2419 = vperm.xlu0 %2418, %v68
    %v2420 = vpop.permute.xlu0 %2419
    %v2422 = vlaneseq
    %v2423 = vshrl.u32 %v2422, 7
    %v2424 = vsub.s32 1, %v2423
    %v2425 = vrot.slane %v86, %v2424
    %v2426 = vmul.f32 %v2420, %v2425
    %v2427 = vadd.f32 %v2417, %v2426
    %v2428 = vld [vmem:[#allocation5 + $0x18] sm:$0xf]
    %v2429 = vld [vmem:[#allocation5 + $0x34] sm:$0xf]
    %v2430 = vld [vmem:[#allocation5 + $0x50] sm:$0xf]
    %v2431 = vld [vmem:[#allocation5 + $0x6c] sm:$0xf]
    %v2432 = vld [vmem:[#allocation5 + $0x88] sm:$0xf]
    %v2433 = vld [vmem:[#allocation5 + $0xa4] sm:$0xf]
    %v2434 = vld [vmem:[#allocation5 + $0xc0] sm:$0xf]
    %v2435 = vld [vmem:[#allocation5 + $0xdc] sm:$0xf]
    %v2436 = vld [vmem:[#allocation5 + $0xf8] sm:$0xf]
    %v2437 = vld [vmem:[#allocation5 + $0x114] sm:$0xf]
    %v2438 = vld [vmem:[#allocation5 + $0x130] sm:$0xf]
    %v2439 = vld [vmem:[#allocation5 + $0x14c] sm:$0xf]
    %v2440 = vld [vmem:[#allocation5 + $0x168] sm:$0xf]
    %v2441 = vld [vmem:[#allocation5 + $0x184] sm:$0xf]
    %v2442 = vld [vmem:[#allocation5 + $0x1a0] sm:$0xf]
    %v2443 = vld [vmem:[#allocation5 + $0x1bc] sm:$0xf]
    %v2444 = vpack.c.bf16 %v2401, %v2401
    %v2445 = vpack.c.bf16 %v2402, %v2402
    %v2448 = vunpack.c.l.b16 %v2444
    %v2449 = vunpack.c.l.b16 %v2445
    %v2450 = vrot.slane %v2449, 7
    %v2451 = vsel %vm1811, %v2450, %v2448
    %v2452 = vpack.c.b16 %v2451, %v2451
    %v2470 = vunpack.c.l.b16 %v2428
    %v2471 = vunpack.c.l.b16 %v2429
    %v2472 = vunpack.c.l.b16 %v2430
    %v2473 = vunpack.c.l.b16 %v2431
    %v2474 = vunpack.c.l.b16 %v2432
    %v2475 = vunpack.c.l.b16 %v2433
    %v2476 = vunpack.c.l.b16 %v2434
    %v2477 = vunpack.c.l.b16 %v2435
    %v2478 = vunpack.c.l.b16 %v2436
    %v2479 = vunpack.c.l.b16 %v2437
    %v2480 = vunpack.c.l.b16 %v2438
    %v2481 = vunpack.c.l.b16 %v2439
    %v2482 = vunpack.c.l.b16 %v2440
    %v2483 = vunpack.c.l.b16 %v2441
    %v2484 = vunpack.c.l.b16 %v2442
    %v2485 = vunpack.c.l.b16 %v2443
    %v2486 = vpack.c.b16 %v2471, %v2470
    %v2487 = vpack.c.b16 %v2473, %v2472
    %v2488 = vpack.c.b16 %v2475, %v2474
    %v2489 = vpack.c.b16 %v2477, %v2476
    %v2490 = vpack.c.b16 %v2479, %v2478
    %v2491 = vpack.c.b16 %v2481, %v2480
    %v2492 = vpack.c.b16 %v2483, %v2482
    %v2493 = vpack.c.b16 %v2485, %v2484
    %2502 = vmatprep.subr.bf16.mxu0 0
    %2503 = vmatpush1.bf16.msra.mxu0 %v2486
    %2504 = vmatprep.subr.bf16.mxu0 0
    %2505 = vmatpush1.bf16.msra.mxu0 %v2487
    %2506 = vmatprep.subr.bf16.mxu0 0
    %2507 = vmatpush1.bf16.msra.mxu0 %v2488
    %2508 = vmatprep.subr.bf16.mxu0 0
    %2509 = vmatpush1.bf16.msra.mxu0 %v2489
    %2510 = vmatprep.subr.bf16.mxu0 0
    %2511 = vmatpush1.bf16.msra.mxu0 %v2490
    %2512 = vmatprep.subr.bf16.mxu0 0
    %2513 = vmatpush1.bf16.msra.mxu0 %v2491
    %2514 = vmatprep.subr.bf16.mxu0 0
    %2515 = vmatpush1.bf16.msra.mxu0 %v2492
    %2516 = vmatprep.subr.bf16.mxu0 0
    %2517 = vmatpush1.bf16.msra.mxu0 %v2493
    %2518 = vmatprep.subr.bf16.mxu0 0
    %2519 = vmatpush1.bf16.msra.mxu0 0
    %2520 = vmatprep.subr.bf16.mxu0 0
    %2521 = vmatpush1.bf16.msra.mxu0 0
    %2522 = vmatprep.subr.bf16.mxu0 0
    %2523 = vmatpush1.bf16.msra.mxu0 0
    %2524 = vmatprep.subr.bf16.mxu0 0
    %2525 = vmatpush1.bf16.msra.mxu0 0
    %2526 = vmatprep.subr.bf16.mxu0 0
    %2527 = vmatpush1.bf16.msra.mxu0 0
    %2528 = vmatprep.subr.bf16.mxu0 0
    %2529 = vmatpush1.bf16.msra.mxu0 0
    %2530 = vmatprep.subr.bf16.mxu0 0
    %2531 = vmatpush1.bf16.msra.mxu0 0
    %2532 = vmatprep.subr.bf16.mxu0 0
    %2533 = vmatpush1.bf16.msra.mxu0 0
    %2534 = vmatprep.mubr.bf16.mxu0 0
    %2535 = vmatmul.mubr.bf16.gmra.mrb[0].mxu0 %v2452
    %v2536 = vpop.f32.mrb[0].mxu0
    %v2537 = vadd.f32 %v2427, %v2536
    %v2538 = vpop.f32.mrb[0].mxu0
    %v2539 = vpop.f32.mrb[0].mxu0
    %v2540 = vpop.f32.mrb[0].mxu0
    %2541 = vdwg.mxu0
    %vm2542 = vcmask 17408
    %2543 = vst.msk [vmem:[#allocation8] sm:$0x3] %vm2542, %v2537
    // Predicated region
    $region38: #{tpu_custom_call.1} parent=1 // pred_check
      _
    $region39: #{tpu_custom_call.1} parent=1 // pred_check_branch
      %2545 = sbr.rel (0) target = $region41
    $region40: #{tpu_custom_call.1} parent=1 // pred_region
      %s2547 = ssub.s32 32, 32
      %2548 = vsyncadd [#allocation4], %s2547
      %s2550 = sshll.u32 [#allocation8], 4
      %s2551 = int_to_ptr.vmem [resolvable:$true] %s2550
      %2553 = dma.vmem_to_hbm [thread:$0]  %s2551, 32, %s6, [#allocation4]
    $region41: #{tpu_custom_call.1} parent=1 // pred_fallthru
      _
    // Predicated region
    $region42: #{tpu_custom_call.1} parent=1 // pred_check
      _
    $region43: #{tpu_custom_call.1} parent=1 // pred_check_branch
      %2555 = sbr.rel (0) target = $region45
    $region44: #{tpu_custom_call.1} parent=1 // pred_region
      %2556 = dma.done [#allocation4], 32
    $region45: #{tpu_custom_call.1} parent=1 // pred_fallthru
      _
    %2557 = vsyncpa [#allocation3], 1
    %2558 = vsyncpa [#allocation6], 1
    %2559 = vsyncpa [#allocation4], 1

</llo_original>
